<compile_context>
chip_gen: v6e
topology: v6e:2x2x1
jax: 0.10.0
libtpu: 0.0.40
codegen_flags: <defaults>
</compile_context>

<pallas_src>
import functools

import jax
import jax.numpy as jnp
from jax.experimental import pallas as pl
from jax.experimental.pallas import tpu as pltpu


def gap_kernel(ab_ref, x_ref, o_ref, *, antiburst, ab_relu, ab_inv, bb, n):
    # ab_ref: SMEM f32[3] = (ab_w, ab_b, ab_p)
    # x_ref : VMEM (bb, D, N)
    # o_ref : VMEM (bb, D, 1)
    inv_n = 1.0 / float(n)

    if antiburst:
        a_w = ab_ref[0]
        a_b = ab_ref[1]
        a_p = ab_ref[2]
        # Fused affine: (-2 + 2*gram) op a_w + a_b  ==  gram*scale + bias
        if ab_inv:
            scale = 2.0 / a_w
        else:
            scale = 2.0 * a_w
        bias = a_b - scale

    for s in range(bb):                      # static, bb is small
        x_in = x_ref[s]                      # (D, N), native dtype
        x = x_in.astype(jnp.float32)

        if antiburst:
            # gram[i, j] = sum_d x[d, i] * x[d, j]  (MXU, contract over D,
            # no explicit transpose of x).
            gram = jax.lax.dot_general(
                x_in, x_in, (((0,), (0,)), ((), ())),
                preferred_element_type=jnp.float32)        # (N, N)

            dis = gram * scale + bias                      # one mul+add pass
            if ab_relu:
                dis = jnp.maximum(dis, 0.0)

            sig = jax.nn.sigmoid(dis)                      # (N, N), EUP
            # dis is symmetric -> sum over sublanes gives the same row sums,
            # already laid out as a (1, N) lane-resident row.
            w = jnp.sum(sig, axis=0, keepdims=True)        # (1, N)
            w = w ** a_p
            inv_w = pl.reciprocal(w, approx=True)          # (1, N)
            x = x * inv_w                                  # (D, N)

        # Global average pool over the spatial (lane) axis.
        pooled = jnp.sum(x, axis=-1, keepdims=True) * inv_n   # (D, 1)
        o_ref[s] = pooled.astype(o_ref.dtype)


def _pick_bb(B, D, N, budget_bytes=32 << 20):
    """Largest divisor of B (<= 8) whose VMEM footprint fits the budget."""
    per_slab = (2 * N * N + 4 * D * N) * 4   # gram + sigmoid temp + 2x x block
    best = 1
    for cand in range(1, min(B, 8) + 1):
        if B % cand == 0 and cand * per_slab <= budget_bytes:
            best = cand
    return best


def gap_forward(x, ab_params, *, antiburst=True, ab_relu=False, ab_inv=False,
                bb=None):
    """GAP forward. x: (B, D, H, W); ab_params: (3,) f32 = (ab_w, ab_b, ab_p).

    Returns (B, D, 1, 1) = adaptive_avg_pool2d(AntiBurst(x) if antiburst else x, 1).
    """
    B, D, H, W = x.shape
    N = H * W
    xf = x.reshape(B, D, N)

    if bb is None:
        bb = _pick_bb(B, D, N)
    assert B % bb == 0

    kern = functools.partial(gap_kernel, antiburst=antiburst, ab_relu=ab_relu,
                             ab_inv=ab_inv, bb=bb, n=N)

    itemsize = jnp.dtype(x.dtype).itemsize
    cost = pl.CostEstimate(
        flops=(2 * B * N * N * D + 3 * B * N * N) if antiburst else (B * D * N),
        transcendentals=(B * N * N) if antiburst else 0,
        bytes_accessed=B * D * N * itemsize + B * D * itemsize,
    )

    out = pl.pallas_call(
        kern,
        out_shape=jax.ShapeDtypeStruct((B, D, 1), x.dtype),
        grid=(B // bb,),
        in_specs=[
            pl.BlockSpec(memory_space=pltpu.MemorySpace.SMEM),      # ab_params
            pl.BlockSpec((bb, D, N), lambda g: (g, 0, 0)),          # x
        ],
        out_specs=pl.BlockSpec((bb, D, 1), lambda g: (g, 0, 0)),
        compiler_params=pltpu.CompilerParams(
            dimension_semantics=("parallel",),
            vmem_limit_bytes=48 * 1024 * 1024),
        cost_estimate=cost,
    )(ab_params, xf)
    return out.reshape(B, D, 1, 1)


def gap_ref(x, ab_params, *, antiburst=True, ab_relu=False, ab_inv=False):
    """Pure-JAX reference mirroring the PyTorch GAP forward."""
    B, D, H, W = x.shape
    xf = x.reshape(B, D, -1).astype(jnp.float32)
    if antiburst:
        dis = -2.0 + 2.0 * jnp.einsum('bdi,bdj->bij', xf, xf)
        dis = dis / ab_params[0] if ab_inv else dis * ab_params[0]
        dis = dis + ab_params[1]
        if ab_relu:
            dis = jnp.maximum(dis, 0.0)
        w = jax.nn.sigmoid(dis).sum(-1) ** ab_params[2]        # (B, N)
        xf = xf / w[:, None, :]
    pooled = xf.mean(axis=-1)                                  # (B, D)
    return pooled.reshape(B, D, 1, 1).astype(x.dtype)


if __name__ == "__main__":
    # Deterministic "args": ab_w, ab_b, ab_p and the static flags.
    AB_W, AB_B, AB_P = 0.5, 0.1, 2.0
    AB_RELU, AB_INV = True, False
    ab_params = jnp.array([AB_W, AB_B, AB_P], dtype=jnp.float32)

    key = jax.random.PRNGKey(0)
    B, D, H, W = 2, 4, 16, 16
    x = jax.random.normal(key, (B, D, H, W), dtype=jnp.float32) * 0.5

    # --- antiburst path (AntiBurst + global average pool) ---
    out = gap_forward(x, ab_params, antiburst=True,
                      ab_relu=AB_RELU, ab_inv=AB_INV)
    out = jax.block_until_ready(out)
    ref = gap_ref(x, ab_params, antiburst=True,
                  ab_relu=AB_RELU, ab_inv=AB_INV)
    assert out.shape == (B, D, 1, 1)
    # approx reciprocal => compare with a tolerance scaled to the output range.
    tol = 5e-3 * float(jnp.max(jnp.abs(ref)))
    assert jnp.allclose(out, ref, atol=tol, rtol=5e-3), "antiburst path mismatch"

    # --- plain GAP path (no antiburst) ---
    out2 = gap_forward(x, ab_params, antiburst=False)
    out2 = jax.block_until_ready(out2)
    ref2 = gap_ref(x, ab_params, antiburst=False)
    assert out2.shape == (B, D, 1, 1)
    assert jnp.allclose(out2, ref2, atol=1e-6, rtol=1e-5), "plain GAP mismatch"

    print("KERNEL_OK")
</pallas_src>

<mosaic_0001>
module attributes {stable_mosaic.version = 11 : i64} {
  func.func @gap_kernel(%arg0: i32, %arg1: memref<3xf32, #tpu.memory_space<smem>>, %arg2: memref<2x4x256xf32, #tpu.memory_space<vmem>>, %arg3: memref<2x4x1xf32, #tpu.memory_space<vmem>>) attributes {dimension_semantics = [#tpu.dimension_semantics<parallel>], iteration_bounds = array<i64: 1>, scalar_prefetch = 0 : i64, scratch_operands = 0 : i64, tpu.core_type = #tpu.core_type<tc>, window_params = [{transform_indices = @transform_0, window_bounds = array<i64: 3>}, {transform_indices = @transform_1, window_bounds = array<i64: 2, 4, 256>}, {transform_indices = @transform_2, window_bounds = array<i64: 2, 4, 1>}]} {
    %c0 = arith.constant 0 : index
    %0 = memref.load %arg1[%c0] : memref<3xf32, #tpu.memory_space<smem>>
    %c1 = arith.constant 1 : index
    %1 = memref.load %arg1[%c1] : memref<3xf32, #tpu.memory_space<smem>>
    %c2 = arith.constant 2 : index
    %2 = memref.load %arg1[%c2] : memref<3xf32, #tpu.memory_space<smem>>
    %cst = arith.constant 2.000000e+00 : f32
    %3 = arith.mulf %cst, %0 : f32
    %4 = arith.subf %1, %3 : f32
    %c0_0 = arith.constant 0 : index
    %c0_1 = arith.constant 0 : index
    %c0_2 = arith.constant 0 : index
    %5 = vector.load %arg2[%c0_0, %c0_1, %c0_2] : memref<2x4x256xf32, #tpu.memory_space<vmem>>, vector<1x4x256xf32>
    %6 = vector.shape_cast %5 : vector<1x4x256xf32> to vector<4x256xf32>
    %cst_3 = arith.constant dense<0.000000e+00> : vector<256x256xf32>
    %7 = tpu.matmul %6, %6, %cst_3 {dimension_numbers = #tpu.dot_dimension_numbers<[0], [0], [1], [1], [0, 1, 1, 1], [], []>} : vector<4x256xf32>, vector<4x256xf32>, vector<256x256xf32> -> vector<256x256xf32>
    %8 = vector.broadcast %3 : f32 to vector<256x256xf32>
    %9 = arith.mulf %7, %8 : vector<256x256xf32>
    %10 = vector.broadcast %4 : f32 to vector<256x256xf32>
    %11 = arith.addf %9, %10 : vector<256x256xf32>
    %cst_4 = arith.constant 0.000000e+00 : f32
    %12 = vector.broadcast %cst_4 : f32 to vector<256x256xf32>
    %13 = arith.maximumf %11, %12 : vector<256x256xf32>
    %14 = arith.negf %13 : vector<256x256xf32>
    %15 = math.exp %14 : vector<256x256xf32>
    %cst_5 = arith.constant 1.000000e+00 : f32
    %16 = vector.broadcast %cst_5 : f32 to vector<256x256xf32>
    %17 = arith.addf %16, %15 : vector<256x256xf32>
    %18 = arith.divf %16, %17 : vector<256x256xf32>
    %cst_6 = arith.constant dense<0.000000e+00> : vector<256xf32>
    %19 = vector.multi_reduction <add>, %18, %cst_6 [0] : vector<256x256xf32> to vector<256xf32>
    %20 = vector.shape_cast %19 : vector<256xf32> to vector<1x256xf32>
    %21 = vector.broadcast %2 : f32 to vector<1x256xf32>
    %22 = math.powf %20, %21 : vector<1x256xf32>
    %23 = tpu.reciprocal %22 {approx = true} : vector<1x256xf32> -> vector<1x256xf32>
    %24 = vector.broadcast %23 : vector<1x256xf32> to vector<4x256xf32>
    %25 = arith.mulf %6, %24 : vector<4x256xf32>
    %cst_7 = arith.constant dense<0.000000e+00> : vector<4xf32>
    %26 = vector.multi_reduction <add>, %25, %cst_7 [1] : vector<4x256xf32> to vector<4xf32>
    %27 = vector.shape_cast %26 : vector<4xf32> to vector<4x1xf32>
    %cst_8 = arith.constant 3.906250e-03 : f32
    %28 = vector.broadcast %cst_8 : f32 to vector<4x1xf32>
    %29 = arith.mulf %27, %28 : vector<4x1xf32>
    %c0_9 = arith.constant 0 : index
    %c0_10 = arith.constant 0 : index
    %c0_11 = arith.constant 0 : index
    %30 = vector.load %arg3[%c0_9, %c0_10, %c0_11] : memref<2x4x1xf32, #tpu.memory_space<vmem>>, vector<1x4x1xf32>
    %31 = vector.shape_cast %30 : vector<1x4x1xf32> to vector<4x1xf32>
    %32 = vector.shape_cast %29 : vector<4x1xf32> to vector<1x4x1xf32>
    tpu.vector_store %arg3[%c0_9, %c0_10, %c0_11], %32 {strides = array<i32>} : memref<2x4x1xf32, #tpu.memory_space<vmem>>, vector<1x4x1xf32>,
    %c1_12 = arith.constant 1 : index
    %c0_13 = arith.constant 0 : index
    %c0_14 = arith.constant 0 : index
    %33 = vector.load %arg2[%c1_12, %c0_13, %c0_14] : memref<2x4x256xf32, #tpu.memory_space<vmem>>, vector<1x4x256xf32>
    %34 = vector.shape_cast %33 : vector<1x4x256xf32> to vector<4x256xf32>
    %cst_15 = arith.constant dense<0.000000e+00> : vector<256x256xf32>
    %35 = tpu.matmul %34, %34, %cst_15 {dimension_numbers = #tpu.dot_dimension_numbers<[0], [0], [1], [1], [0, 1, 1, 1], [], []>} : vector<4x256xf32>, vector<4x256xf32>, vector<256x256xf32> -> vector<256x256xf32>
    %36 = vector.broadcast %3 : f32 to vector<256x256xf32>
    %37 = arith.mulf %35, %36 : vector<256x256xf32>
    %38 = vector.broadcast %4 : f32 to vector<256x256xf32>
    %39 = arith.addf %37, %38 : vector<256x256xf32>
    %cst_16 = arith.constant 0.000000e+00 : f32
    %40 = vector.broadcast %cst_16 : f32 to vector<256x256xf32>
    %41 = arith.maximumf %39, %40 : vector<256x256xf32>
    %42 = arith.negf %41 : vector<256x256xf32>
    %43 = math.exp %42 : vector<256x256xf32>
    %cst_17 = arith.constant 1.000000e+00 : f32
    %44 = vector.broadcast %cst_17 : f32 to vector<256x256xf32>
    %45 = arith.addf %44, %43 : vector<256x256xf32>
    %46 = arith.divf %44, %45 : vector<256x256xf32>
    %cst_18 = arith.constant dense<0.000000e+00> : vector<256xf32>
    %47 = vector.multi_reduction <add>, %46, %cst_18 [0] : vector<256x256xf32> to vector<256xf32>
    %48 = vector.shape_cast %47 : vector<256xf32> to vector<1x256xf32>
    %49 = vector.broadcast %2 : f32 to vector<1x256xf32>
    %50 = math.powf %48, %49 : vector<1x256xf32>
    %51 = tpu.reciprocal %50 {approx = true} : vector<1x256xf32> -> vector<1x256xf32>
    %52 = vector.broadcast %51 : vector<1x256xf32> to vector<4x256xf32>
    %53 = arith.mulf %34, %52 : vector<4x256xf32>
    %cst_19 = arith.constant dense<0.000000e+00> : vector<4xf32>
    %54 = vector.multi_reduction <add>, %53, %cst_19 [1] : vector<4x256xf32> to vector<4xf32>
    %55 = vector.shape_cast %54 : vector<4xf32> to vector<4x1xf32>
    %cst_20 = arith.constant 3.906250e-03 : f32
    %56 = vector.broadcast %cst_20 : f32 to vector<4x1xf32>
    %57 = arith.mulf %55, %56 : vector<4x1xf32>
    %c1_21 = arith.constant 1 : index
    %c0_22 = arith.constant 0 : index
    %c0_23 = arith.constant 0 : index
    %58 = vector.load %arg3[%c1_21, %c0_22, %c0_23] : memref<2x4x1xf32, #tpu.memory_space<vmem>>, vector<1x4x1xf32>
    %59 = vector.shape_cast %58 : vector<1x4x1xf32> to vector<4x1xf32>
    %60 = vector.shape_cast %57 : vector<4x1xf32> to vector<1x4x1xf32>
    tpu.vector_store %arg3[%c1_21, %c0_22, %c0_23], %60 {strides = array<i32>} : memref<2x4x1xf32, #tpu.memory_space<vmem>>, vector<1x4x1xf32>,
    return
  }
  func.func @transform_0(%arg0: i32) -> i32 {
    %c0_i32 = arith.constant 0 : i32
    %c0_i32_0 = arith.constant 0 : i32
    return %c0_i32 : i32
  }
  func.func @transform_1(%arg0: i32) -> (i32, i32, i32) {
    %c0_i32 = arith.constant 0 : i32
    %c0_i32_0 = arith.constant 0 : i32
    %c0_i32_1 = arith.constant 0 : i32
    return %arg0, %c0_i32, %c0_i32_0 : i32, i32, i32
  }
  func.func @transform_2(%arg0: i32) -> (i32, i32, i32) {
    %c0_i32 = arith.constant 0 : i32
    %c0_i32_0 = arith.constant 0 : i32
    %c0_i32_1 = arith.constant 0 : i32
    return %arg0, %c0_i32, %c0_i32_0 : i32, i32, i32
  }
}

</mosaic_0001>

<llo_original>
// kernel: tpu_custom_call.1
$region0: #{tpu_custom_call.1}
  #allocation0 [shape = 'u32[]', space=smem, size = 0x4, offset = 0x4, fixed_abs, tag = 'smem constant byte address 0x4 - core index']
  #allocation1 [shape = 'u32[144,128]{1,0:T(1,128)}', space=vmem, size = 0x12000, scoped, tag = 'internal scratch']
  %s0 = inlined_call_operand.hbm [shape: f32[3], index: 0, kind: input, shape index: {}]
  %s1 = inlined_call_operand.hbm [shape: f32[2,4,256], index: 1, kind: input, shape index: {}]
  %s2 = inlined_call_operand.vmem [shape: f32[2,4,1], index: 2, kind: output, shape index: {}]
  %s3 = sld [smem:[#allocation0]]
  $region26: #{tpu_custom_call.1} parent=0
    _
  %s5 = ssub.s32 1, %s3
  %s6 = scalar_select 0, %s5, %s3
  $region1: #{tpu_custom_call.1} parent=0
    #allocation2 [shape = 'u8[512]{0}', space=smem, size = 0x200, scoped, tag = 'input window, operand 0, single buffered']
    #allocation3 [shape = 's32[1]{0}', space=sflag, size = 0x4, scoped, tag = 'scoped memory for tpu_custom_call.1']
    #allocation4 [shape = 's32[1]{0}', space=sflag, size = 0x4, scoped, tag = 'scoped memory for tpu_custom_call.1']
    #allocation5 [shape = 'u8[8192]{0}', space=vmem, size = 0x2000, scoped, tag = 'input window, operand 1, single buffered']
    %7 = vsyncpa [#allocation4], 0
    %8 = vsyncpa [#allocation3], 0
    // Predicated region
    $region2: #{tpu_custom_call.1} parent=1 // pred_check
      _
    $region3: #{tpu_custom_call.1} parent=1 // pred_check_branch
      %10 = sbr.rel (0) target = $region5
    $region4: #{tpu_custom_call.1} parent=1 // pred_region
      %s12 = ssub.s32 16, 16
      %13 = vsyncadd [#allocation4], %s12
      %16 = dma.hbm_to_smem %s0, 16, [#allocation2], [#allocation4]
    $region5: #{tpu_custom_call.1} parent=1 // pred_fallthru
      _
    // Predicated region
    $region6: #{tpu_custom_call.1} parent=1 // pred_check
      _
    $region7: #{tpu_custom_call.1} parent=1 // pred_check_branch
      %18 = sbr.rel (0) target = $region9
    $region8: #{tpu_custom_call.1} parent=1 // pred_region
      %s20 = ssub.s32 256, 256
      %21 = vsyncadd [#allocation3], %s20
      %s22 = sshll.u32 [#allocation5], 4
      %s23 = int_to_ptr.vmem [resolvable:$true] %s22
      %28 = dma.hbm_to_vmem [thread:$0]  %s1, 256, %s23, [#allocation3], 128, 128, 8
    $region9: #{tpu_custom_call.1} parent=1 // pred_fallthru
      _
    // Predicated region
    $region10: #{tpu_custom_call.1} parent=1 // pred_check
      _
    $region11: #{tpu_custom_call.1} parent=1 // pred_check_branch
      %30 = sbr.rel (0) target = $region13
    $region12: #{tpu_custom_call.1} parent=1 // pred_region
      %31 = dma.done [#allocation4], 16
    $region13: #{tpu_custom_call.1} parent=1 // pred_fallthru
      _
    // Predicated region
    $region14: #{tpu_custom_call.1} parent=1 // pred_check
      _
    $region15: #{tpu_custom_call.1} parent=1 // pred_check_branch
      %33 = sbr.rel (0) target = $region17
    $region16: #{tpu_custom_call.1} parent=1 // pred_region
      %34 = dma.done [#allocation3], 256
    $region17: #{tpu_custom_call.1} parent=1 // pred_fallthru
      _
    %35 = sfence
    %s36 = sld [smem:[#allocation2]]
    %s37 = sld [smem:[#allocation2 + $0x1]]
    %s38 = sld [smem:[#allocation2 + $0x2]]
    %s39 = smul.f32 %s36, 2.0
    %s40 = ssub.f32 %s37, %s39
    %v41 = vld [vmem:[#allocation5] sm:$0xff]
    %v43 = vcombine.high %v41, %v41
    %45 = vxpose.xlu0.b32.start [1/16] %v41, 128
    %46 = vxpose.xlu0.b32.cont [2/16] 0.0, 128
    %47 = vxpose.xlu0.b32.cont [3/16] 0.0, 128
    %48 = vxpose.xlu0.b32.cont [4/16] 0.0, 128
    %49 = vxpose.xlu0.b32.cont [5/16] 0.0, 128
    %50 = vxpose.xlu0.b32.cont [6/16] 0.0, 128
    %51 = vxpose.xlu0.b32.cont [7/16] 0.0, 128
    %52 = vxpose.xlu0.b32.cont [8/16] 0.0, 128
    %53 = vxpose.xlu0.b32.cont [9/16] 0.0, 128
    %54 = vxpose.xlu0.b32.cont [10/16] 0.0, 128
    %55 = vxpose.xlu0.b32.cont [11/16] 0.0, 128
    %56 = vxpose.xlu0.b32.cont [12/16] 0.0, 128
    %57 = vxpose.xlu0.b32.cont [13/16] 0.0, 128
    %58 = vxpose.xlu0.b32.cont [14/16] 0.0, 128
    %59 = vxpose.xlu0.b32.cont [15/16] 0.0, 128
    %60 = vxpose.xlu0.b32.end [16/16] 0.0, 128
    %v61 = vpop.trf.xlu0
    %v62 = vpop.trf.xlu0
    %v63 = vpop.trf.xlu0
    %v64 = vpop.trf.xlu0
    %v65 = vpop.trf.xlu0
    %v66 = vpop.trf.xlu0
    %v67 = vpop.trf.xlu0
    %v68 = vpop.trf.xlu0
    %v69 = vpop.trf.xlu0
    %v70 = vpop.trf.xlu0
    %v71 = vpop.trf.xlu0
    %v72 = vpop.trf.xlu0
    %v73 = vpop.trf.xlu0
    %v74 = vpop.trf.xlu0
    %v75 = vpop.trf.xlu0
    %v76 = vpop.trf.xlu0
    %77 = vxpose.xlu0.b32.start [1/16] %v43, 128
    %78 = vxpose.xlu0.b32.cont [2/16] 0.0, 128
    %79 = vxpose.xlu0.b32.cont [3/16] 0.0, 128
    %80 = vxpose.xlu0.b32.cont [4/16] 0.0, 128
    %81 = vxpose.xlu0.b32.cont [5/16] 0.0, 128
    %82 = vxpose.xlu0.b32.cont [6/16] 0.0, 128
    %83 = vxpose.xlu0.b32.cont [7/16] 0.0, 128
    %84 = vxpose.xlu0.b32.cont [8/16] 0.0, 128
    %85 = vxpose.xlu0.b32.cont [9/16] 0.0, 128
    %86 = vxpose.xlu0.b32.cont [10/16] 0.0, 128
    %87 = vxpose.xlu0.b32.cont [11/16] 0.0, 128
    %88 = vxpose.xlu0.b32.cont [12/16] 0.0, 128
    %89 = vxpose.xlu0.b32.cont [13/16] 0.0, 128
    %90 = vxpose.xlu0.b32.cont [14/16] 0.0, 128
    %91 = vxpose.xlu0.b32.cont [15/16] 0.0, 128
    %92 = vxpose.xlu0.b32.end [16/16] 0.0, 128
    %v93 = vpop.trf.xlu0
    %v94 = vpop.trf.xlu0
    %v95 = vpop.trf.xlu0
    %v96 = vpop.trf.xlu0
    %v97 = vpop.trf.xlu0
    %v98 = vpop.trf.xlu0
    %v99 = vpop.trf.xlu0
    %v100 = vpop.trf.xlu0
    %v101 = vpop.trf.xlu0
    %v102 = vpop.trf.xlu0
    %v103 = vpop.trf.xlu0
    %v104 = vpop.trf.xlu0
    %v105 = vpop.trf.xlu0
    %v106 = vpop.trf.xlu0
    %v107 = vpop.trf.xlu0
    %v108 = vpop.trf.xlu0
    %vm109 = vcmask 31744
    %v111 = vsel %vm109, %v61, 0
    %v114 = vsel %vm109, %v62, 0
    %v117 = vsel %vm109, %v63, 0
    %v120 = vsel %vm109, %v64, 0
    %v123 = vsel %vm109, %v65, 0
    %v126 = vsel %vm109, %v66, 0
    %v129 = vsel %vm109, %v67, 0
    %v132 = vsel %vm109, %v68, 0
    %v135 = vsel %vm109, %v69, 0
    %v138 = vsel %vm109, %v70, 0
    %v141 = vsel %vm109, %v71, 0
    %v144 = vsel %vm109, %v72, 0
    %v147 = vsel %vm109, %v73, 0
    %v150 = vsel %vm109, %v74, 0
    %v153 = vsel %vm109, %v75, 0
    %v156 = vsel %vm109, %v76, 0
    %v159 = vsel %vm109, %v93, 0
    %v162 = vsel %vm109, %v94, 0
    %v165 = vsel %vm109, %v95, 0
    %v168 = vsel %vm109, %v96, 0
    %v171 = vsel %vm109, %v97, 0
    %v174 = vsel %vm109, %v98, 0
    %v177 = vsel %vm109, %v99, 0
    %v180 = vsel %vm109, %v100, 0
    %v183 = vsel %vm109, %v101, 0
    %v186 = vsel %vm109, %v102, 0
    %v189 = vsel %vm109, %v103, 0
    %v192 = vsel %vm109, %v104, 0
    %v195 = vsel %vm109, %v105, 0
    %v198 = vsel %vm109, %v106, 0
    %v201 = vsel %vm109, %v107, 0
    %v204 = vsel %vm109, %v108, 0
    %vm206 = vcmask 1043456
    %v207 = vsel %vm206, %v41, 0
    %v209 = vsel %vm206, %v43, 0
    %211 = vmatprep.subr.mxu0 0.0
    %212 = vmatpush1.msra.mxu0 0.0
    %213 = vmatprep.subr.mxu0 0.0
    %214 = vmatpush1.msra.mxu0 0.0
    %215 = vmatprep.subr.mxu0 0.0
    %216 = vmatpush1.msra.mxu0 0.0
    %217 = vmatprep.subr.mxu0 0.0
    %218 = vmatpush1.msra.mxu0 0.0
    %219 = vmatprep.subr.mxu0 0.0
    %220 = vmatpush1.msra.mxu0 0.0
    %221 = vmatprep.subr.mxu0 0.0
    %222 = vmatpush1.msra.mxu0 0.0
    %223 = vmatprep.subr.mxu0 0.0
    %224 = vmatpush1.msra.mxu0 0.0
    %225 = vmatprep.subr.mxu0 0.0
    %226 = vmatpush1.msra.mxu0 0.0
    %227 = vmatprep.subr.mxu0 0.0
    %228 = vmatpush1.msra.mxu0 0.0
    %229 = vmatprep.subr.mxu0 0.0
    %230 = vmatpush1.msra.mxu0 0.0
    %231 = vmatprep.subr.mxu0 0.0
    %232 = vmatpush1.msra.mxu0 0.0
    %233 = vmatprep.subr.mxu0 0.0
    %234 = vmatpush1.msra.mxu0 0.0
    %235 = vmatprep.subr.mxu0 0.0
    %236 = vmatpush1.msra.mxu0 0.0
    %237 = vmatprep.subr.mxu0 0.0
    %238 = vmatpush1.msra.mxu0 0.0
    %239 = vmatprep.subr.mxu0 0.0
    %240 = vmatpush1.msra.mxu0 0.0
    %241 = vmatprep.subr.mxu0 %v209
    %242 = vmatpush1.msra.mxu0 %v207
    %243 = vmatprep.subr.mxu0 0.0
    %244 = vmatpush2.msra.mxu0 0.0
    %245 = vmatprep.subr.mxu0 0.0
    %246 = vmatpush2.msra.mxu0 0.0
    %247 = vmatprep.subr.mxu0 0.0
    %248 = vmatpush2.msra.mxu0 0.0
    %249 = vmatprep.subr.mxu0 0.0
    %250 = vmatpush2.msra.mxu0 0.0
    %251 = vmatprep.subr.mxu0 0.0
    %252 = vmatpush2.msra.mxu0 0.0
    %253 = vmatprep.subr.mxu0 0.0
    %254 = vmatpush2.msra.mxu0 0.0
    %255 = vmatprep.subr.mxu0 0.0
    %256 = vmatpush2.msra.mxu0 0.0
    %257 = vmatprep.subr.mxu0 0.0
    %258 = vmatpush2.msra.mxu0 0.0
    %259 = vmatprep.subr.mxu0 0.0
    %260 = vmatpush2.msra.mxu0 0.0
    %261 = vmatprep.subr.mxu0 0.0
    %262 = vmatpush2.msra.mxu0 0.0
    %263 = vmatprep.subr.mxu0 0.0
    %264 = vmatpush2.msra.mxu0 0.0
    %265 = vmatprep.subr.mxu0 0.0
    %266 = vmatpush2.msra.mxu0 0.0
    %267 = vmatprep.subr.mxu0 0.0
    %268 = vmatpush2.msra.mxu0 0.0
    %269 = vmatprep.subr.mxu0 0.0
    %270 = vmatpush2.msra.mxu0 0.0
    %271 = vmatprep.subr.mxu0 0.0
    %272 = vmatpush2.msra.mxu0 0.0
    %273 = vmatprep.subr.mxu0 0.0
    %274 = vmatpush2.msra.mxu0 0.0
    %275 = vmatprep.mubr.f32.mxu0 0.0
    %276 = vmatmul.mubr.f32.gmra.mxu0 %v111
    %v277 = vpop.f32.mrf.mxu0
    %v278 = vadd.f32 0.0, %v277
    %v279 = vpop.f32.mrf.mxu0
    %v280 = vadd.f32 0.0, %v279
    %281 = vmatprep.mubr.f32.mxu0 0.0
    %282 = vmatmul.mubr.f32.gmra.mxu0 %v114
    %v283 = vpop.f32.mrf.mxu0
    %v284 = vadd.f32 0.0, %v283
    %v285 = vpop.f32.mrf.mxu0
    %v286 = vadd.f32 0.0, %v285
    %287 = vmatprep.mubr.f32.mxu0 0.0
    %288 = vmatmul.mubr.f32.gmra.mxu0 %v117
    %v289 = vpop.f32.mrf.mxu0
    %v290 = vadd.f32 0.0, %v289
    %v291 = vpop.f32.mrf.mxu0
    %v292 = vadd.f32 0.0, %v291
    %293 = vmatprep.mubr.f32.mxu0 0.0
    %294 = vmatmul.mubr.f32.gmra.mxu0 %v120
    %v295 = vpop.f32.mrf.mxu0
    %v296 = vadd.f32 0.0, %v295
    %v297 = vpop.f32.mrf.mxu0
    %v298 = vadd.f32 0.0, %v297
    %299 = vmatprep.mubr.f32.mxu0 0.0
    %300 = vmatmul.mubr.f32.gmra.mxu0 %v123
    %v301 = vpop.f32.mrf.mxu0
    %v302 = vadd.f32 0.0, %v301
    %v303 = vpop.f32.mrf.mxu0
    %v304 = vadd.f32 0.0, %v303
    %305 = vmatprep.mubr.f32.mxu0 0.0
    %306 = vmatmul.mubr.f32.gmra.mxu0 %v126
    %v307 = vpop.f32.mrf.mxu0
    %v308 = vadd.f32 0.0, %v307
    %v309 = vpop.f32.mrf.mxu0
    %v310 = vadd.f32 0.0, %v309
    %311 = vmatprep.mubr.f32.mxu0 0.0
    %312 = vmatmul.mubr.f32.gmra.mxu0 %v129
    %v313 = vpop.f32.mrf.mxu0
    %v314 = vadd.f32 0.0, %v313
    %v315 = vpop.f32.mrf.mxu0
    %v316 = vadd.f32 0.0, %v315
    %317 = vmatprep.mubr.f32.mxu0 0.0
    %318 = vmatmul.mubr.f32.gmra.mxu0 %v132
    %v319 = vpop.f32.mrf.mxu0
    %v320 = vadd.f32 0.0, %v319
    %v321 = vpop.f32.mrf.mxu0
    %v322 = vadd.f32 0.0, %v321
    %323 = vmatprep.mubr.f32.mxu0 0.0
    %324 = vmatmul.mubr.f32.gmra.mxu0 %v135
    %v325 = vpop.f32.mrf.mxu0
    %v326 = vadd.f32 0.0, %v325
    %v327 = vpop.f32.mrf.mxu0
    %v328 = vadd.f32 0.0, %v327
    %329 = vmatprep.mubr.f32.mxu0 0.0
    %330 = vmatmul.mubr.f32.gmra.mxu0 %v138
    %v331 = vpop.f32.mrf.mxu0
    %v332 = vadd.f32 0.0, %v331
    %v333 = vpop.f32.mrf.mxu0
    %v334 = vadd.f32 0.0, %v333
    %335 = vmatprep.mubr.f32.mxu0 0.0
    %336 = vmatmul.mubr.f32.gmra.mxu0 %v141
    %v337 = vpop.f32.mrf.mxu0
    %v338 = vadd.f32 0.0, %v337
    %v339 = vpop.f32.mrf.mxu0
    %v340 = vadd.f32 0.0, %v339
    %341 = vmatprep.mubr.f32.mxu0 0.0
    %342 = vmatmul.mubr.f32.gmra.mxu0 %v144
    %v343 = vpop.f32.mrf.mxu0
    %v344 = vadd.f32 0.0, %v343
    %v345 = vpop.f32.mrf.mxu0
    %v346 = vadd.f32 0.0, %v345
    %347 = vmatprep.mubr.f32.mxu0 0.0
    %348 = vmatmul.mubr.f32.gmra.mxu0 %v147
    %v349 = vpop.f32.mrf.mxu0
    %v350 = vadd.f32 0.0, %v349
    %v351 = vpop.f32.mrf.mxu0
    %v352 = vadd.f32 0.0, %v351
    %353 = vmatprep.mubr.f32.mxu0 0.0
    %354 = vmatmul.mubr.f32.gmra.mxu0 %v150
    %v355 = vpop.f32.mrf.mxu0
    %v356 = vadd.f32 0.0, %v355
    %v357 = vpop.f32.mrf.mxu0
    %v358 = vadd.f32 0.0, %v357
    %359 = vmatprep.mubr.f32.mxu0 0.0
    %360 = vmatmul.mubr.f32.gmra.mxu0 %v153
    %v361 = vpop.f32.mrf.mxu0
    %v362 = vadd.f32 0.0, %v361
    %v363 = vpop.f32.mrf.mxu0
    %v364 = vadd.f32 0.0, %v363
    %365 = vmatprep.mubr.f32.mxu0 0.0
    %366 = vmatmul.mubr.f32.gmra.mxu0 %v156
    %v367 = vpop.f32.mrf.mxu0
    %v368 = vadd.f32 0.0, %v367
    %v369 = vpop.f32.mrf.mxu0
    %v370 = vadd.f32 0.0, %v369
    %371 = vmatprep.mubr.f32.mxu0 0.0
    %372 = vmatmul.mubr.f32.gmra.mxu0 %v159
    %v373 = vpop.f32.mrf.mxu0
    %v374 = vadd.f32 0.0, %v373
    %v375 = vpop.f32.mrf.mxu0
    %v376 = vadd.f32 0.0, %v375
    %377 = vmatprep.mubr.f32.mxu0 0.0
    %378 = vmatmul.mubr.f32.gmra.mxu0 %v162
    %v379 = vpop.f32.mrf.mxu0
    %v380 = vadd.f32 0.0, %v379
    %v381 = vpop.f32.mrf.mxu0
    %v382 = vadd.f32 0.0, %v381
    %383 = vmatprep.mubr.f32.mxu0 0.0
    %384 = vmatmul.mubr.f32.gmra.mxu0 %v165
    %v385 = vpop.f32.mrf.mxu0
    %v386 = vadd.f32 0.0, %v385
    %v387 = vpop.f32.mrf.mxu0
    %v388 = vadd.f32 0.0, %v387
    %389 = vmatprep.mubr.f32.mxu0 0.0
    %390 = vmatmul.mubr.f32.gmra.mxu0 %v168
    %v391 = vpop.f32.mrf.mxu0
    %v392 = vadd.f32 0.0, %v391
    %v393 = vpop.f32.mrf.mxu0
    %v394 = vadd.f32 0.0, %v393
    %395 = vmatprep.mubr.f32.mxu0 0.0
    %396 = vmatmul.mubr.f32.gmra.mxu0 %v171
    %v397 = vpop.f32.mrf.mxu0
    %v398 = vadd.f32 0.0, %v397
    %v399 = vpop.f32.mrf.mxu0
    %v400 = vadd.f32 0.0, %v399
    %401 = vmatprep.mubr.f32.mxu0 0.0
    %402 = vmatmul.mubr.f32.gmra.mxu0 %v174
    %v403 = vpop.f32.mrf.mxu0
    %v404 = vadd.f32 0.0, %v403
    %v405 = vpop.f32.mrf.mxu0
    %v406 = vadd.f32 0.0, %v405
    %407 = vmatprep.mubr.f32.mxu0 0.0
    %408 = vmatmul.mubr.f32.gmra.mxu0 %v177
    %v409 = vpop.f32.mrf.mxu0
    %v410 = vadd.f32 0.0, %v409
    %v411 = vpop.f32.mrf.mxu0
    %v412 = vadd.f32 0.0, %v411
    %413 = vmatprep.mubr.f32.mxu0 0.0
    %414 = vmatmul.mubr.f32.gmra.mxu0 %v180
    %v415 = vpop.f32.mrf.mxu0
    %v416 = vadd.f32 0.0, %v415
    %v417 = vpop.f32.mrf.mxu0
    %v418 = vadd.f32 0.0, %v417
    %419 = vmatprep.mubr.f32.mxu0 0.0
    %420 = vmatmul.mubr.f32.gmra.mxu0 %v183
    %v421 = vpop.f32.mrf.mxu0
    %v422 = vadd.f32 0.0, %v421
    %v423 = vpop.f32.mrf.mxu0
    %v424 = vadd.f32 0.0, %v423
    %425 = vmatprep.mubr.f32.mxu0 0.0
    %426 = vmatmul.mubr.f32.gmra.mxu0 %v186
    %v427 = vpop.f32.mrf.mxu0
    %v428 = vadd.f32 0.0, %v427
    %v429 = vpop.f32.mrf.mxu0
    %v430 = vadd.f32 0.0, %v429
    %431 = vmatprep.mubr.f32.mxu0 0.0
    %432 = vmatmul.mubr.f32.gmra.mxu0 %v189
    %v433 = vpop.f32.mrf.mxu0
    %v434 = vadd.f32 0.0, %v433
    %v435 = vpop.f32.mrf.mxu0
    %v436 = vadd.f32 0.0, %v435
    %437 = vmatprep.mubr.f32.mxu0 0.0
    %438 = vmatmul.mubr.f32.gmra.mxu0 %v192
    %v439 = vpop.f32.mrf.mxu0
    %v440 = vadd.f32 0.0, %v439
    %v441 = vpop.f32.mrf.mxu0
    %v442 = vadd.f32 0.0, %v441
    %443 = vmatprep.mubr.f32.mxu0 0.0
    %444 = vmatmul.mubr.f32.gmra.mxu0 %v195
    %v445 = vpop.f32.mrf.mxu0
    %v446 = vadd.f32 0.0, %v445
    %v447 = vpop.f32.mrf.mxu0
    %v448 = vadd.f32 0.0, %v447
    %449 = vmatprep.mubr.f32.mxu0 0.0
    %450 = vmatmul.mubr.f32.gmra.mxu0 %v198
    %v451 = vpop.f32.mrf.mxu0
    %v452 = vadd.f32 0.0, %v451
    %v453 = vpop.f32.mrf.mxu0
    %v454 = vadd.f32 0.0, %v453
    %455 = vmatprep.mubr.f32.mxu0 0.0
    %456 = vmatmul.mubr.f32.gmra.mxu0 %v201
    %v457 = vpop.f32.mrf.mxu0
    %v458 = vadd.f32 0.0, %v457
    %v459 = vpop.f32.mrf.mxu0
    %v460 = vadd.f32 0.0, %v459
    %461 = vmatprep.mubr.f32.mxu0 0.0
    %462 = vmatmul.mubr.f32.gmra.mxu0 %v204
    %v463 = vpop.f32.mrf.mxu0
    %v464 = vadd.f32 0.0, %v463
    %v465 = vpop.f32.mrf.mxu0
    %v466 = vadd.f32 0.0, %v465
    %467 = vdwg.mxu0
    %v468 = vstv %s39
    %v469 = vmul.f32 %v278, %v468
    %v470 = vmul.f32 %v280, %v468
    %v471 = vmul.f32 %v284, %v468
    %v472 = vmul.f32 %v286, %v468
    %v473 = vmul.f32 %v290, %v468
    %v474 = vmul.f32 %v292, %v468
    %v475 = vmul.f32 %v296, %v468
    %v476 = vmul.f32 %v298, %v468
    %v477 = vmul.f32 %v302, %v468
    %v478 = vmul.f32 %v304, %v468
    %v479 = vmul.f32 %v308, %v468
    %v480 = vmul.f32 %v310, %v468
    %v481 = vmul.f32 %v314, %v468
    %v482 = vmul.f32 %v316, %v468
    %v483 = vmul.f32 %v320, %v468
    %v484 = vmul.f32 %v322, %v468
    %v485 = vmul.f32 %v326, %v468
    %v486 = vmul.f32 %v328, %v468
    %v487 = vmul.f32 %v332, %v468
    %v488 = vmul.f32 %v334, %v468
    %v489 = vmul.f32 %v338, %v468
    %v490 = vmul.f32 %v340, %v468
    %v491 = vmul.f32 %v344, %v468
    %v492 = vmul.f32 %v346, %v468
    %v493 = vmul.f32 %v350, %v468
    %v494 = vmul.f32 %v352, %v468
    %v495 = vmul.f32 %v356, %v468
    %v496 = vmul.f32 %v358, %v468
    %v497 = vmul.f32 %v362, %v468
    %v498 = vmul.f32 %v364, %v468
    %v499 = vmul.f32 %v368, %v468
    %v500 = vmul.f32 %v370, %v468
    %v501 = vmul.f32 %v374, %v468
    %v502 = vmul.f32 %v376, %v468
    %v503 = vmul.f32 %v380, %v468
    %v504 = vmul.f32 %v382, %v468
    %v505 = vmul.f32 %v386, %v468
    %v506 = vmul.f32 %v388, %v468
    %v507 = vmul.f32 %v392, %v468
    %v508 = vmul.f32 %v394, %v468
    %v509 = vmul.f32 %v398, %v468
    %v510 = vmul.f32 %v400, %v468
    %v511 = vmul.f32 %v404, %v468
    %v512 = vmul.f32 %v406, %v468
    %v513 = vmul.f32 %v410, %v468
    %v514 = vmul.f32 %v412, %v468
    %v515 = vmul.f32 %v416, %v468
    %v516 = vmul.f32 %v418, %v468
    %v517 = vmul.f32 %v422, %v468
    %v518 = vmul.f32 %v424, %v468
    %v519 = vmul.f32 %v428, %v468
    %v520 = vmul.f32 %v430, %v468
    %v521 = vmul.f32 %v434, %v468
    %v522 = vmul.f32 %v436, %v468
    %v523 = vmul.f32 %v440, %v468
    %v524 = vmul.f32 %v442, %v468
    %v525 = vmul.f32 %v446, %v468
    %v526 = vmul.f32 %v448, %v468
    %v527 = vmul.f32 %v452, %v468
    %v528 = vmul.f32 %v454, %v468
    %v529 = vmul.f32 %v458, %v468
    %v530 = vmul.f32 %v460, %v468
    %v531 = vmul.f32 %v464, %v468
    %v532 = vmul.f32 %v466, %v468
    %v533 = vstv %s40
    %v534 = vadd.f32 %v469, %v533
    %v535 = vadd.f32 %v470, %v533
    %v536 = vadd.f32 %v471, %v533
    %v537 = vadd.f32 %v472, %v533
    %v538 = vadd.f32 %v473, %v533
    %v539 = vadd.f32 %v474, %v533
    %v540 = vadd.f32 %v475, %v533
    %v541 = vadd.f32 %v476, %v533
    %v542 = vadd.f32 %v477, %v533
    %v543 = vadd.f32 %v478, %v533
    %v544 = vadd.f32 %v479, %v533
    %v545 = vadd.f32 %v480, %v533
    %v546 = vadd.f32 %v481, %v533
    %v547 = vadd.f32 %v482, %v533
    %v548 = vadd.f32 %v483, %v533
    %v549 = vadd.f32 %v484, %v533
    %v550 = vadd.f32 %v485, %v533
    %v551 = vadd.f32 %v486, %v533
    %v552 = vadd.f32 %v487, %v533
    %v553 = vadd.f32 %v488, %v533
    %v554 = vadd.f32 %v489, %v533
    %v555 = vadd.f32 %v490, %v533
    %v556 = vadd.f32 %v491, %v533
    %v557 = vadd.f32 %v492, %v533
    %v558 = vadd.f32 %v493, %v533
    %v559 = vadd.f32 %v494, %v533
    %v560 = vadd.f32 %v495, %v533
    %v561 = vadd.f32 %v496, %v533
    %v562 = vadd.f32 %v497, %v533
    %v563 = vadd.f32 %v498, %v533
    %v564 = vadd.f32 %v499, %v533
    %v565 = vadd.f32 %v500, %v533
    %v566 = vadd.f32 %v501, %v533
    %v567 = vadd.f32 %v502, %v533
    %v568 = vadd.f32 %v503, %v533
    %v569 = vadd.f32 %v504, %v533
    %v570 = vadd.f32 %v505, %v533
    %v571 = vadd.f32 %v506, %v533
    %v572 = vadd.f32 %v507, %v533
    %v573 = vadd.f32 %v508, %v533
    %v574 = vadd.f32 %v509, %v533
    %v575 = vadd.f32 %v510, %v533
    %v576 = vadd.f32 %v511, %v533
    %v577 = vadd.f32 %v512, %v533
    %v578 = vadd.f32 %v513, %v533
    %v579 = vadd.f32 %v514, %v533
    %v580 = vadd.f32 %v515, %v533
    %v581 = vadd.f32 %v516, %v533
    %v582 = vadd.f32 %v517, %v533
    %v583 = vadd.f32 %v518, %v533
    %v584 = vadd.f32 %v519, %v533
    %v585 = vadd.f32 %v520, %v533
    %v586 = vadd.f32 %v521, %v533
    %v587 = vadd.f32 %v522, %v533
    %v588 = vadd.f32 %v523, %v533
    %v589 = vadd.f32 %v524, %v533
    %v590 = vadd.f32 %v525, %v533
    %v591 = vadd.f32 %v526, %v533
    %v592 = vadd.f32 %v527, %v533
    %v593 = vadd.f32 %v528, %v533
    %v594 = vadd.f32 %v529, %v533
    %v595 = vadd.f32 %v530, %v533
    %v596 = vadd.f32 %v531, %v533
    %v597 = vadd.f32 %v532, %v533
    %v598 = vmax.f32 %v534, 0.0
    %v599 = vmax.f32 %v535, 0.0
    %v600 = vmax.f32 %v536, 0.0
    %v601 = vmax.f32 %v537, 0.0
    %v602 = vmax.f32 %v538, 0.0
    %v603 = vmax.f32 %v539, 0.0
    %v604 = vmax.f32 %v540, 0.0
    %v605 = vmax.f32 %v541, 0.0
    %v606 = vmax.f32 %v542, 0.0
    %v607 = vmax.f32 %v543, 0.0
    %v608 = vmax.f32 %v544, 0.0
    %v609 = vmax.f32 %v545, 0.0
    %v610 = vmax.f32 %v546, 0.0
    %v611 = vmax.f32 %v547, 0.0
    %v612 = vmax.f32 %v548, 0.0
    %v613 = vmax.f32 %v549, 0.0
    %v614 = vmax.f32 %v550, 0.0
    %v615 = vmax.f32 %v551, 0.0
    %v616 = vmax.f32 %v552, 0.0
    %v617 = vmax.f32 %v553, 0.0
    %v618 = vmax.f32 %v554, 0.0
    %v619 = vmax.f32 %v555, 0.0
    %v620 = vmax.f32 %v556, 0.0
    %v621 = vmax.f32 %v557, 0.0
    %v622 = vmax.f32 %v558, 0.0
    %v623 = vmax.f32 %v559, 0.0
    %v624 = vmax.f32 %v560, 0.0
    %v625 = vmax.f32 %v561, 0.0
    %v626 = vmax.f32 %v562, 0.0
    %v627 = vmax.f32 %v563, 0.0
    %v628 = vmax.f32 %v564, 0.0
    %v629 = vmax.f32 %v565, 0.0
    %v630 = vmax.f32 %v566, 0.0
    %v631 = vmax.f32 %v567, 0.0
    %v632 = vmax.f32 %v568, 0.0
    %v633 = vmax.f32 %v569, 0.0
    %v634 = vmax.f32 %v570, 0.0
    %v635 = vmax.f32 %v571, 0.0
    %v636 = vmax.f32 %v572, 0.0
    %v637 = vmax.f32 %v573, 0.0
    %v638 = vmax.f32 %v574, 0.0
    %v639 = vmax.f32 %v575, 0.0
    %v640 = vmax.f32 %v576, 0.0
    %v641 = vmax.f32 %v577, 0.0
    %v642 = vmax.f32 %v578, 0.0
    %v643 = vmax.f32 %v579, 0.0
    %v644 = vmax.f32 %v580, 0.0
    %v645 = vmax.f32 %v581, 0.0
    %v646 = vmax.f32 %v582, 0.0
    %v647 = vmax.f32 %v583, 0.0
    %v648 = vmax.f32 %v584, 0.0
    %v649 = vmax.f32 %v585, 0.0
    %v650 = vmax.f32 %v586, 0.0
    %v651 = vmax.f32 %v587, 0.0
    %v652 = vmax.f32 %v588, 0.0
    %v653 = vmax.f32 %v589, 0.0
    %v654 = vmax.f32 %v590, 0.0
    %v655 = vmax.f32 %v591, 0.0
    %v656 = vmax.f32 %v592, 0.0
    %v657 = vmax.f32 %v593, 0.0
    %v658 = vmax.f32 %v594, 0.0
    %v659 = vmax.f32 %v595, 0.0
    %v660 = vmax.f32 %v596, 0.0
    %v661 = vmax.f32 %v597, 0.0
    %v662 = vxor.u32 %v598, 2147483648
    %v663 = vxor.u32 %v599, 2147483648
    %v664 = vxor.u32 %v600, 2147483648
    %v665 = vxor.u32 %v601, 2147483648
    %v666 = vxor.u32 %v602, 2147483648
    %v667 = vxor.u32 %v603, 2147483648
    %v668 = vxor.u32 %v604, 2147483648
    %v669 = vxor.u32 %v605, 2147483648
    %v670 = vxor.u32 %v606, 2147483648
    %v671 = vxor.u32 %v607, 2147483648
    %v672 = vxor.u32 %v608, 2147483648
    %v673 = vxor.u32 %v609, 2147483648
    %v674 = vxor.u32 %v610, 2147483648
    %v675 = vxor.u32 %v611, 2147483648
    %v676 = vxor.u32 %v612, 2147483648
    %v677 = vxor.u32 %v613, 2147483648
    %v678 = vxor.u32 %v614, 2147483648
    %v679 = vxor.u32 %v615, 2147483648
    %v680 = vxor.u32 %v616, 2147483648
    %v681 = vxor.u32 %v617, 2147483648
    %v682 = vxor.u32 %v618, 2147483648
    %v683 = vxor.u32 %v619, 2147483648
    %v684 = vxor.u32 %v620, 2147483648
    %v685 = vxor.u32 %v621, 2147483648
    %v686 = vxor.u32 %v622, 2147483648
    %v687 = vxor.u32 %v623, 2147483648
    %v688 = vxor.u32 %v624, 2147483648
    %v689 = vxor.u32 %v625, 2147483648
    %v690 = vxor.u32 %v626, 2147483648
    %v691 = vxor.u32 %v627, 2147483648
    %v692 = vxor.u32 %v628, 2147483648
    %v693 = vxor.u32 %v629, 2147483648
    %v694 = vxor.u32 %v630, 2147483648
    %v695 = vxor.u32 %v631, 2147483648
    %v696 = vxor.u32 %v632, 2147483648
    %v697 = vxor.u32 %v633, 2147483648
    %v698 = vxor.u32 %v634, 2147483648
    %v699 = vxor.u32 %v635, 2147483648
    %v700 = vxor.u32 %v636, 2147483648
    %v701 = vxor.u32 %v637, 2147483648
    %v702 = vxor.u32 %v638, 2147483648
    %v703 = vxor.u32 %v639, 2147483648
    %v704 = vxor.u32 %v640, 2147483648
    %v705 = vxor.u32 %v641, 2147483648
    %v706 = vxor.u32 %v642, 2147483648
    %v707 = vxor.u32 %v643, 2147483648
    %v708 = vxor.u32 %v644, 2147483648
    %v709 = vxor.u32 %v645, 2147483648
    %v710 = vxor.u32 %v646, 2147483648
    %v711 = vxor.u32 %v647, 2147483648
    %v712 = vxor.u32 %v648, 2147483648
    %v713 = vxor.u32 %v649, 2147483648
    %v714 = vxor.u32 %v650, 2147483648
    %v715 = vxor.u32 %v651, 2147483648
    %v716 = vxor.u32 %v652, 2147483648
    %v717 = vxor.u32 %v653, 2147483648
    %v718 = vxor.u32 %v654, 2147483648
    %v719 = vxor.u32 %v655, 2147483648
    %v720 = vxor.u32 %v656, 2147483648
    %v721 = vxor.u32 %v657, 2147483648
    %v722 = vxor.u32 %v658, 2147483648
    %v723 = vxor.u32 %v659, 2147483648
    %v724 = vxor.u32 %v660, 2147483648
    %v725 = vxor.u32 %v661, 2147483648
    %v726 = vmul.f32 %v662, 1.442695
    %v727 = vpow.pop %v726
    %v728 = vmul.f32 %v663, 1.442695
    %v729 = vpow.pop %v728
    %v730 = vmul.f32 %v664, 1.442695
    %v731 = vpow.pop %v730
    %v732 = vmul.f32 %v665, 1.442695
    %v733 = vpow.pop %v732
    %v734 = vmul.f32 %v666, 1.442695
    %v735 = vpow.pop %v734
    %v736 = vmul.f32 %v667, 1.442695
    %v737 = vpow.pop %v736
    %v738 = vmul.f32 %v668, 1.442695
    %v739 = vpow.pop %v738
    %v740 = vmul.f32 %v669, 1.442695
    %v741 = vpow.pop %v740
    %v742 = vmul.f32 %v670, 1.442695
    %v743 = vpow.pop %v742
    %v744 = vmul.f32 %v671, 1.442695
    %v745 = vpow.pop %v744
    %v746 = vmul.f32 %v672, 1.442695
    %v747 = vpow.pop %v746
    %v748 = vmul.f32 %v673, 1.442695
    %v749 = vpow.pop %v748
    %v750 = vmul.f32 %v674, 1.442695
    %v751 = vpow.pop %v750
    %v752 = vmul.f32 %v675, 1.442695
    %v753 = vpow.pop %v752
    %v754 = vmul.f32 %v676, 1.442695
    %v755 = vpow.pop %v754
    %v756 = vmul.f32 %v677, 1.442695
    %v757 = vpow.pop %v756
    %v758 = vmul.f32 %v678, 1.442695
    %v759 = vpow.pop %v758
    %v760 = vmul.f32 %v679, 1.442695
    %v761 = vpow.pop %v760
    %v762 = vmul.f32 %v680, 1.442695
    %v763 = vpow.pop %v762
    %v764 = vmul.f32 %v681, 1.442695
    %v765 = vpow.pop %v764
    %v766 = vmul.f32 %v682, 1.442695
    %v767 = vpow.pop %v766
    %v768 = vmul.f32 %v683, 1.442695
    %v769 = vpow.pop %v768
    %v770 = vmul.f32 %v684, 1.442695
    %v771 = vpow.pop %v770
    %v772 = vmul.f32 %v685, 1.442695
    %v773 = vpow.pop %v772
    %v774 = vmul.f32 %v686, 1.442695
    %v775 = vpow.pop %v774
    %v776 = vmul.f32 %v687, 1.442695
    %v777 = vpow.pop %v776
    %v778 = vmul.f32 %v688, 1.442695
    %v779 = vpow.pop %v778
    %v780 = vmul.f32 %v689, 1.442695
    %v781 = vpow.pop %v780
    %v782 = vmul.f32 %v690, 1.442695
    %v783 = vpow.pop %v782
    %v784 = vmul.f32 %v691, 1.442695
    %v785 = vpow.pop %v784
    %v786 = vmul.f32 %v692, 1.442695
    %v787 = vpow.pop %v786
    %v788 = vmul.f32 %v693, 1.442695
    %v789 = vpow.pop %v788
    %v790 = vmul.f32 %v694, 1.442695
    %v791 = vpow.pop %v790
    %v792 = vmul.f32 %v695, 1.442695
    %v793 = vpow.pop %v792
    %v794 = vmul.f32 %v696, 1.442695
    %v795 = vpow.pop %v794
    %v796 = vmul.f32 %v697, 1.442695
    %v797 = vpow.pop %v796
    %v798 = vmul.f32 %v698, 1.442695
    %v799 = vpow.pop %v798
    %v800 = vmul.f32 %v699, 1.442695
    %v801 = vpow.pop %v800
    %v802 = vmul.f32 %v700, 1.442695
    %v803 = vpow.pop %v802
    %v804 = vmul.f32 %v701, 1.442695
    %v805 = vpow.pop %v804
    %v806 = vmul.f32 %v702, 1.442695
    %v807 = vpow.pop %v806
    %v808 = vmul.f32 %v703, 1.442695
    %v809 = vpow.pop %v808
    %v810 = vmul.f32 %v704, 1.442695
    %v811 = vpow.pop %v810
    %v812 = vmul.f32 %v705, 1.442695
    %v813 = vpow.pop %v812
    %v814 = vmul.f32 %v706, 1.442695
    %v815 = vpow.pop %v814
    %v816 = vmul.f32 %v707, 1.442695
    %v817 = vpow.pop %v816
    %v818 = vmul.f32 %v708, 1.442695
    %v819 = vpow.pop %v818
    %v820 = vmul.f32 %v709, 1.442695
    %v821 = vpow.pop %v820
    %v822 = vmul.f32 %v710, 1.442695
    %v823 = vpow.pop %v822
    %v824 = vmul.f32 %v711, 1.442695
    %v825 = vpow.pop %v824
    %v826 = vmul.f32 %v712, 1.442695
    %v827 = vpow.pop %v826
    %v828 = vmul.f32 %v713, 1.442695
    %v829 = vpow.pop %v828
    %v830 = vmul.f32 %v714, 1.442695
    %v831 = vpow.pop %v830
    %v832 = vmul.f32 %v715, 1.442695
    %v833 = vpow.pop %v832
    %v834 = vmul.f32 %v716, 1.442695
    %v835 = vpow.pop %v834
    %v836 = vmul.f32 %v717, 1.442695
    %v837 = vpow.pop %v836
    %v838 = vmul.f32 %v718, 1.442695
    %v839 = vpow.pop %v838
    %v840 = vmul.f32 %v719, 1.442695
    %v841 = vpow.pop %v840
    %v842 = vmul.f32 %v720, 1.442695
    %v843 = vpow.pop %v842
    %v844 = vmul.f32 %v721, 1.442695
    %v845 = vpow.pop %v844
    %v846 = vmul.f32 %v722, 1.442695
    %v847 = vpow.pop %v846
    %v848 = vmul.f32 %v723, 1.442695
    %v849 = vpow.pop %v848
    %v850 = vmul.f32 %v724, 1.442695
    %v851 = vpow.pop %v850
    %v852 = vmul.f32 %v725, 1.442695
    %v853 = vpow.pop %v852
    %v854 = vadd.f32 %v727, 1.0
    %v855 = vadd.f32 %v729, 1.0
    %v856 = vadd.f32 %v731, 1.0
    %v857 = vadd.f32 %v733, 1.0
    %v858 = vadd.f32 %v735, 1.0
    %v859 = vadd.f32 %v737, 1.0
    %v860 = vadd.f32 %v739, 1.0
    %v861 = vadd.f32 %v741, 1.0
    %v862 = vadd.f32 %v743, 1.0
    %v863 = vadd.f32 %v745, 1.0
    %v864 = vadd.f32 %v747, 1.0
    %v865 = vadd.f32 %v749, 1.0
    %v866 = vadd.f32 %v751, 1.0
    %v867 = vadd.f32 %v753, 1.0
    %v868 = vadd.f32 %v755, 1.0
    %v869 = vadd.f32 %v757, 1.0
    %v870 = vadd.f32 %v759, 1.0
    %v871 = vadd.f32 %v761, 1.0
    %v872 = vadd.f32 %v763, 1.0
    %v873 = vadd.f32 %v765, 1.0
    %v874 = vadd.f32 %v767, 1.0
    %v875 = vadd.f32 %v769, 1.0
    %v876 = vadd.f32 %v771, 1.0
    %v877 = vadd.f32 %v773, 1.0
    %v878 = vadd.f32 %v775, 1.0
    %v879 = vadd.f32 %v777, 1.0
    %v880 = vadd.f32 %v779, 1.0
    %v881 = vadd.f32 %v781, 1.0
    %v882 = vadd.f32 %v783, 1.0
    %v883 = vadd.f32 %v785, 1.0
    %v884 = vadd.f32 %v787, 1.0
    %v885 = vadd.f32 %v789, 1.0
    %v886 = vadd.f32 %v791, 1.0
    %v887 = vadd.f32 %v793, 1.0
    %v888 = vadd.f32 %v795, 1.0
    %v889 = vadd.f32 %v797, 1.0
    %v890 = vadd.f32 %v799, 1.0
    %v891 = vadd.f32 %v801, 1.0
    %v892 = vadd.f32 %v803, 1.0
    %v893 = vadd.f32 %v805, 1.0
    %v894 = vadd.f32 %v807, 1.0
    %v895 = vadd.f32 %v809, 1.0
    %v896 = vadd.f32 %v811, 1.0
    %v897 = vadd.f32 %v813, 1.0
    %v898 = vadd.f32 %v815, 1.0
    %v899 = vadd.f32 %v817, 1.0
    %v900 = vadd.f32 %v819, 1.0
    %v901 = vadd.f32 %v821, 1.0
    %v902 = vadd.f32 %v823, 1.0
    %v903 = vadd.f32 %v825, 1.0
    %v904 = vadd.f32 %v827, 1.0
    %v905 = vadd.f32 %v829, 1.0
    %v906 = vadd.f32 %v831, 1.0
    %v907 = vadd.f32 %v833, 1.0
    %v908 = vadd.f32 %v835, 1.0
    %v909 = vadd.f32 %v837, 1.0
    %v910 = vadd.f32 %v839, 1.0
    %v911 = vadd.f32 %v841, 1.0
    %v912 = vadd.f32 %v843, 1.0
    %v913 = vadd.f32 %v845, 1.0
    %v914 = vadd.f32 %v847, 1.0
    %v915 = vadd.f32 %v849, 1.0
    %v916 = vadd.f32 %v851, 1.0
    %v917 = vadd.f32 %v853, 1.0
    %v918 = vrcp.pop %v854
    %v919 = vmul.f32 1.0, %v918
    %v920 = vrcp.pop %v855
    %v921 = vmul.f32 1.0, %v920
    %v922 = vrcp.pop %v856
    %v923 = vmul.f32 1.0, %v922
    %v924 = vrcp.pop %v857
    %v925 = vmul.f32 1.0, %v924
    %v926 = vrcp.pop %v858
    %v927 = vmul.f32 1.0, %v926
    %v928 = vrcp.pop %v859
    %v929 = vmul.f32 1.0, %v928
    %v930 = vrcp.pop %v860
    %v931 = vmul.f32 1.0, %v930
    %v932 = vrcp.pop %v861
    %v933 = vmul.f32 1.0, %v932
    %v934 = vrcp.pop %v862
    %v935 = vmul.f32 1.0, %v934
    %v936 = vrcp.pop %v863
    %v937 = vmul.f32 1.0, %v936
    %v938 = vrcp.pop %v864
    %v939 = vmul.f32 1.0, %v938
    %v940 = vrcp.pop %v865
    %v941 = vmul.f32 1.0, %v940
    %v942 = vrcp.pop %v866
    %v943 = vmul.f32 1.0, %v942
    %v944 = vrcp.pop %v867
    %v945 = vmul.f32 1.0, %v944
    %v946 = vrcp.pop %v868
    %v947 = vmul.f32 1.0, %v946
    %v948 = vrcp.pop %v869
    %v949 = vmul.f32 1.0, %v948
    %v950 = vrcp.pop %v870
    %v951 = vmul.f32 1.0, %v950
    %v952 = vrcp.pop %v871
    %v953 = vmul.f32 1.0, %v952
    %v954 = vrcp.pop %v872
    %v955 = vmul.f32 1.0, %v954
    %v956 = vrcp.pop %v873
    %v957 = vmul.f32 1.0, %v956
    %v958 = vrcp.pop %v874
    %v959 = vmul.f32 1.0, %v958
    %v960 = vrcp.pop %v875
    %v961 = vmul.f32 1.0, %v960
    %v962 = vrcp.pop %v876
    %v963 = vmul.f32 1.0, %v962
    %v964 = vrcp.pop %v877
    %v965 = vmul.f32 1.0, %v964
    %v966 = vrcp.pop %v878
    %v967 = vmul.f32 1.0, %v966
    %v968 = vrcp.pop %v879
    %v969 = vmul.f32 1.0, %v968
    %v970 = vrcp.pop %v880
    %v971 = vmul.f32 1.0, %v970
    %v972 = vrcp.pop %v881
    %v973 = vmul.f32 1.0, %v972
    %v974 = vrcp.pop %v882
    %v975 = vmul.f32 1.0, %v974
    %v976 = vrcp.pop %v883
    %v977 = vmul.f32 1.0, %v976
    %v978 = vrcp.pop %v884
    %v979 = vmul.f32 1.0, %v978
    %v980 = vrcp.pop %v885
    %v981 = vmul.f32 1.0, %v980
    %v982 = vrcp.pop %v886
    %v983 = vmul.f32 1.0, %v982
    %v984 = vrcp.pop %v887
    %v985 = vmul.f32 1.0, %v984
    %v986 = vrcp.pop %v888
    %v987 = vmul.f32 1.0, %v986
    %v988 = vrcp.pop %v889
    %v989 = vmul.f32 1.0, %v988
    %v990 = vrcp.pop %v890
    %v991 = vmul.f32 1.0, %v990
    %v992 = vrcp.pop %v891
    %v993 = vmul.f32 1.0, %v992
    %v994 = vrcp.pop %v892
    %v995 = vmul.f32 1.0, %v994
    %v996 = vrcp.pop %v893
    %v997 = vmul.f32 1.0, %v996
    %v998 = vrcp.pop %v894
    %v999 = vmul.f32 1.0, %v998
    %v1000 = vrcp.pop %v895
    %v1001 = vmul.f32 1.0, %v1000
    %v1002 = vrcp.pop %v896
    %v1003 = vmul.f32 1.0, %v1002
    %v1004 = vrcp.pop %v897
    %v1005 = vmul.f32 1.0, %v1004
    %v1006 = vrcp.pop %v898
    %v1007 = vmul.f32 1.0, %v1006
    %v1008 = vrcp.pop %v899
    %v1009 = vmul.f32 1.0, %v1008
    %v1010 = vrcp.pop %v900
    %v1011 = vmul.f32 1.0, %v1010
    %v1012 = vrcp.pop %v901
    %v1013 = vmul.f32 1.0, %v1012
    %v1014 = vrcp.pop %v902
    %v1015 = vmul.f32 1.0, %v1014
    %v1016 = vrcp.pop %v903
    %v1017 = vmul.f32 1.0, %v1016
    %v1018 = vrcp.pop %v904
    %v1019 = vmul.f32 1.0, %v1018
    %v1020 = vrcp.pop %v905
    %v1021 = vmul.f32 1.0, %v1020
    %v1022 = vrcp.pop %v906
    %v1023 = vmul.f32 1.0, %v1022
    %v1024 = vrcp.pop %v907
    %v1025 = vmul.f32 1.0, %v1024
    %v1026 = vrcp.pop %v908
    %v1027 = vmul.f32 1.0, %v1026
    %v1028 = vrcp.pop %v909
    %v1029 = vmul.f32 1.0, %v1028
    %v1030 = vrcp.pop %v910
    %v1031 = vmul.f32 1.0, %v1030
    %v1032 = vrcp.pop %v911
    %v1033 = vmul.f32 1.0, %v1032
    %v1034 = vrcp.pop %v912
    %v1035 = vmul.f32 1.0, %v1034
    %v1036 = vrcp.pop %v913
    %v1037 = vmul.f32 1.0, %v1036
    %v1038 = vrcp.pop %v914
    %v1039 = vmul.f32 1.0, %v1038
    %v1040 = vrcp.pop %v915
    %v1041 = vmul.f32 1.0, %v1040
    %v1042 = vrcp.pop %v916
    %v1043 = vmul.f32 1.0, %v1042
    %v1044 = vrcp.pop %v917
    %v1045 = vmul.f32 1.0, %v1044
    %v1046 = vadd.f32 %v919, %v923
    %v1047 = vadd.f32 %v1046, %v927
    %v1048 = vadd.f32 %v1047, %v931
    %v1049 = vadd.f32 %v1048, %v935
    %v1050 = vadd.f32 %v1049, %v939
    %v1051 = vadd.f32 %v1050, %v943
    %v1052 = vadd.f32 %v1051, %v947
    %v1053 = vadd.f32 %v1052, %v951
    %v1054 = vadd.f32 %v1053, %v955
    %v1055 = vadd.f32 %v1054, %v959
    %v1056 = vadd.f32 %v1055, %v963
    %v1057 = vadd.f32 %v1056, %v967
    %v1058 = vadd.f32 %v1057, %v971
    %v1059 = vadd.f32 %v1058, %v975
    %v1060 = vadd.f32 %v1059, %v979
    %v1061 = vadd.f32 %v1060, %v983
    %v1062 = vadd.f32 %v1061, %v987
    %v1063 = vadd.f32 %v1062, %v991
    %v1064 = vadd.f32 %v1063, %v995
    %v1065 = vadd.f32 %v1064, %v999
    %v1066 = vadd.f32 %v1065, %v1003
    %v1067 = vadd.f32 %v1066, %v1007
    %v1068 = vadd.f32 %v1067, %v1011
    %v1069 = vadd.f32 %v1068, %v1015
    %v1070 = vadd.f32 %v1069, %v1019
    %v1071 = vadd.f32 %v1070, %v1023
    %v1072 = vadd.f32 %v1071, %v1027
    %v1073 = vadd.f32 %v1072, %v1031
    %v1074 = vadd.f32 %v1073, %v1035
    %v1075 = vadd.f32 %v1074, %v1039
    %v1076 = vadd.f32 %v1075, %v1043
    %v1077 = vrot.slane %v1076, 4
    %v1078 = vadd.f32 %v1076, %v1077
    %v1079 = vrot.slane %v1078, 2
    %v1080 = vadd.f32 %v1078, %v1079
    %v1081 = vrot.slane %v1080, 1
    %v1082 = vadd.f32 %v1080, %v1081
    %v1083 = vadd.f32 %v921, %v925
    %v1084 = vadd.f32 %v1083, %v929
    %v1085 = vadd.f32 %v1084, %v933
    %v1086 = vadd.f32 %v1085, %v937
    %v1087 = vadd.f32 %v1086, %v941
    %v1088 = vadd.f32 %v1087, %v945
    %v1089 = vadd.f32 %v1088, %v949
    %v1090 = vadd.f32 %v1089, %v953
    %v1091 = vadd.f32 %v1090, %v957
    %v1092 = vadd.f32 %v1091, %v961
    %v1093 = vadd.f32 %v1092, %v965
    %v1094 = vadd.f32 %v1093, %v969
    %v1095 = vadd.f32 %v1094, %v973
    %v1096 = vadd.f32 %v1095, %v977
    %v1097 = vadd.f32 %v1096, %v981
    %v1098 = vadd.f32 %v1097, %v985
    %v1099 = vadd.f32 %v1098, %v989
    %v1100 = vadd.f32 %v1099, %v993
    %v1101 = vadd.f32 %v1100, %v997
    %v1102 = vadd.f32 %v1101, %v1001
    %v1103 = vadd.f32 %v1102, %v1005
    %v1104 = vadd.f32 %v1103, %v1009
    %v1105 = vadd.f32 %v1104, %v1013
    %v1106 = vadd.f32 %v1105, %v1017
    %v1107 = vadd.f32 %v1106, %v1021
    %v1108 = vadd.f32 %v1107, %v1025
    %v1109 = vadd.f32 %v1108, %v1029
    %v1110 = vadd.f32 %v1109, %v1033
    %v1111 = vadd.f32 %v1110, %v1037
    %v1112 = vadd.f32 %v1111, %v1041
    %v1113 = vadd.f32 %v1112, %v1045
    %v1114 = vrot.slane %v1113, 4
    %v1115 = vadd.f32 %v1113, %v1114
    %v1116 = vrot.slane %v1115, 2
    %v1117 = vadd.f32 %v1115, %v1116
    %v1118 = vrot.slane %v1117, 1
    %v1119 = vadd.f32 %v1117, %v1118
    %v1120 = vstv %s38
    %v1121 = vpow.f32 %v1082, %v1120
    %v1122 = vpow.f32 %v1119, %v1120
    %v1123 = vrcp.pop %v1121
    %v1124 = vrcp.pop %v1122
    %v1127 = vcombine.low %v1123, %v1124
    %v1129 = vmul.f32 %v41, %v1127
    %v1131 = vcombine.high %v1129, %v1129
    %v1133 = vsel %vm206, %v1129, 0.0
    %v1134 = vsel %vm206, %v1131, 0.0
    %v1135 = vadd.f32 %v1133, %v1134
    %1136 = vadd.xlane.f32.xlu0 %v1135
    %v1137 = vpop.xlane.xlu0 %1136
    %v1138 = vmul.f32 %v1137, 0.00390625
    %vm1139 = vcmask 3072
    %1140 = vst.msk [vmem:[%s2] sm:$0xf] %vm1139, %v1138
    %s1141 = scalar_lea.vmem [#allocation5], 8
    %v1142 = vld [vmem:[%s1141] sm:$0xff]
    %v1144 = vcombine.high %v1142, %v1142
    %1146 = vxpose.xlu0.b32.start [1/16] %v1142, 128
    %1147 = vxpose.xlu0.b32.cont [2/16] 0.0, 128
    %1148 = vxpose.xlu0.b32.cont [3/16] 0.0, 128
    %1149 = vxpose.xlu0.b32.cont [4/16] 0.0, 128
    %1150 = vxpose.xlu0.b32.cont [5/16] 0.0, 128
    %1151 = vxpose.xlu0.b32.cont [6/16] 0.0, 128
    %1152 = vxpose.xlu0.b32.cont [7/16] 0.0, 128
    %1153 = vxpose.xlu0.b32.cont [8/16] 0.0, 128
    %1154 = vxpose.xlu0.b32.cont [9/16] 0.0, 128
    %1155 = vxpose.xlu0.b32.cont [10/16] 0.0, 128
    %1156 = vxpose.xlu0.b32.cont [11/16] 0.0, 128
    %1157 = vxpose.xlu0.b32.cont [12/16] 0.0, 128
    %1158 = vxpose.xlu0.b32.cont [13/16] 0.0, 128
    %1159 = vxpose.xlu0.b32.cont [14/16] 0.0, 128
    %1160 = vxpose.xlu0.b32.cont [15/16] 0.0, 128
    %1161 = vxpose.xlu0.b32.end [16/16] 0.0, 128
    %v1162 = vpop.trf.xlu0
    %v1163 = vpop.trf.xlu0
    %v1164 = vpop.trf.xlu0
    %v1165 = vpop.trf.xlu0
    %v1166 = vpop.trf.xlu0
    %v1167 = vpop.trf.xlu0
    %v1168 = vpop.trf.xlu0
    %v1169 = vpop.trf.xlu0
    %v1170 = vpop.trf.xlu0
    %v1171 = vpop.trf.xlu0
    %v1172 = vpop.trf.xlu0
    %v1173 = vpop.trf.xlu0
    %v1174 = vpop.trf.xlu0
    %v1175 = vpop.trf.xlu0
    %v1176 = vpop.trf.xlu0
    %v1177 = vpop.trf.xlu0
    %1178 = vxpose.xlu0.b32.start [1/16] %v1144, 128
    %1179 = vxpose.xlu0.b32.cont [2/16] 0.0, 128
    %1180 = vxpose.xlu0.b32.cont [3/16] 0.0, 128
    %1181 = vxpose.xlu0.b32.cont [4/16] 0.0, 128
    %1182 = vxpose.xlu0.b32.cont [5/16] 0.0, 128
    %1183 = vxpose.xlu0.b32.cont [6/16] 0.0, 128
    %1184 = vxpose.xlu0.b32.cont [7/16] 0.0, 128
    %1185 = vxpose.xlu0.b32.cont [8/16] 0.0, 128
    %1186 = vxpose.xlu0.b32.cont [9/16] 0.0, 128
    %1187 = vxpose.xlu0.b32.cont [10/16] 0.0, 128
    %1188 = vxpose.xlu0.b32.cont [11/16] 0.0, 128
    %1189 = vxpose.xlu0.b32.cont [12/16] 0.0, 128
    %1190 = vxpose.xlu0.b32.cont [13/16] 0.0, 128
    %1191 = vxpose.xlu0.b32.cont [14/16] 0.0, 128
    %1192 = vxpose.xlu0.b32.cont [15/16] 0.0, 128
    %1193 = vxpose.xlu0.b32.end [16/16] 0.0, 128
    %v1194 = vpop.trf.xlu0
    %v1195 = vpop.trf.xlu0
    %v1196 = vpop.trf.xlu0
    %v1197 = vpop.trf.xlu0
    %v1198 = vpop.trf.xlu0
    %v1199 = vpop.trf.xlu0
    %v1200 = vpop.trf.xlu0
    %v1201 = vpop.trf.xlu0
    %v1202 = vpop.trf.xlu0
    %v1203 = vpop.trf.xlu0
    %v1204 = vpop.trf.xlu0
    %v1205 = vpop.trf.xlu0
    %v1206 = vpop.trf.xlu0
    %v1207 = vpop.trf.xlu0
    %v1208 = vpop.trf.xlu0
    %v1209 = vpop.trf.xlu0
    %v1211 = vsel %vm109, %v1162, 0
    %v1214 = vsel %vm109, %v1163, 0
    %v1217 = vsel %vm109, %v1164, 0
    %v1220 = vsel %vm109, %v1165, 0
    %v1223 = vsel %vm109, %v1166, 0
    %v1226 = vsel %vm109, %v1167, 0
    %v1229 = vsel %vm109, %v1168, 0
    %v1232 = vsel %vm109, %v1169, 0
    %v1235 = vsel %vm109, %v1170, 0
    %v1238 = vsel %vm109, %v1171, 0
    %v1241 = vsel %vm109, %v1172, 0
    %v1244 = vsel %vm109, %v1173, 0
    %v1247 = vsel %vm109, %v1174, 0
    %v1250 = vsel %vm109, %v1175, 0
    %v1253 = vsel %vm109, %v1176, 0
    %v1256 = vsel %vm109, %v1177, 0
    %v1259 = vsel %vm109, %v1194, 0
    %v1262 = vsel %vm109, %v1195, 0
    %v1265 = vsel %vm109, %v1196, 0
    %v1268 = vsel %vm109, %v1197, 0
    %v1271 = vsel %vm109, %v1198, 0
    %v1274 = vsel %vm109, %v1199, 0
    %v1277 = vsel %vm109, %v1200, 0
    %v1280 = vsel %vm109, %v1201, 0
    %v1283 = vsel %vm109, %v1202, 0
    %v1286 = vsel %vm109, %v1203, 0
    %v1289 = vsel %vm109, %v1204, 0
    %v1292 = vsel %vm109, %v1205, 0
    %v1295 = vsel %vm109, %v1206, 0
    %v1298 = vsel %vm109, %v1207, 0
    %v1301 = vsel %vm109, %v1208, 0
    %v1304 = vsel %vm109, %v1209, 0
    %v1306 = vsel %vm206, %v1142, 0
    %v1308 = vsel %vm206, %v1144, 0
    %1310 = vmatprep.subr.mxu0 0.0
    %1311 = vmatpush1.msra.mxu0 0.0
    %1312 = vmatprep.subr.mxu0 0.0
    %1313 = vmatpush1.msra.mxu0 0.0
    %1314 = vmatprep.subr.mxu0 0.0
    %1315 = vmatpush1.msra.mxu0 0.0
    %1316 = vmatprep.subr.mxu0 0.0
    %1317 = vmatpush1.msra.mxu0 0.0
    %1318 = vmatprep.subr.mxu0 0.0
    %1319 = vmatpush1.msra.mxu0 0.0
    %1320 = vmatprep.subr.mxu0 0.0
    %1321 = vmatpush1.msra.mxu0 0.0
    %1322 = vmatprep.subr.mxu0 0.0
    %1323 = vmatpush1.msra.mxu0 0.0
    %1324 = vmatprep.subr.mxu0 0.0
    %1325 = vmatpush1.msra.mxu0 0.0
    %1326 = vmatprep.subr.mxu0 0.0
    %1327 = vmatpush1.msra.mxu0 0.0
    %1328 = vmatprep.subr.mxu0 0.0
    %1329 = vmatpush1.msra.mxu0 0.0
    %1330 = vmatprep.subr.mxu0 0.0
    %1331 = vmatpush1.msra.mxu0 0.0
    %1332 = vmatprep.subr.mxu0 0.0
    %1333 = vmatpush1.msra.mxu0 0.0
    %1334 = vmatprep.subr.mxu0 0.0
    %1335 = vmatpush1.msra.mxu0 0.0
    %1336 = vmatprep.subr.mxu0 0.0
    %1337 = vmatpush1.msra.mxu0 0.0
    %1338 = vmatprep.subr.mxu0 0.0
    %1339 = vmatpush1.msra.mxu0 0.0
    %1340 = vmatprep.subr.mxu0 %v1308
    %1341 = vmatpush1.msra.mxu0 %v1306
    %1342 = vmatprep.subr.mxu0 0.0
    %1343 = vmatpush2.msra.mxu0 0.0
    %1344 = vmatprep.subr.mxu0 0.0
    %1345 = vmatpush2.msra.mxu0 0.0
    %1346 = vmatprep.subr.mxu0 0.0
    %1347 = vmatpush2.msra.mxu0 0.0
    %1348 = vmatprep.subr.mxu0 0.0
    %1349 = vmatpush2.msra.mxu0 0.0
    %1350 = vmatprep.subr.mxu0 0.0
    %1351 = vmatpush2.msra.mxu0 0.0
    %1352 = vmatprep.subr.mxu0 0.0
    %1353 = vmatpush2.msra.mxu0 0.0
    %1354 = vmatprep.subr.mxu0 0.0
    %1355 = vmatpush2.msra.mxu0 0.0
    %1356 = vmatprep.subr.mxu0 0.0
    %1357 = vmatpush2.msra.mxu0 0.0
    %1358 = vmatprep.subr.mxu0 0.0
    %1359 = vmatpush2.msra.mxu0 0.0
    %1360 = vmatprep.subr.mxu0 0.0
    %1361 = vmatpush2.msra.mxu0 0.0
    %1362 = vmatprep.subr.mxu0 0.0
    %1363 = vmatpush2.msra.mxu0 0.0
    %1364 = vmatprep.subr.mxu0 0.0
    %1365 = vmatpush2.msra.mxu0 0.0
    %1366 = vmatprep.subr.mxu0 0.0
    %1367 = vmatpush2.msra.mxu0 0.0
    %1368 = vmatprep.subr.mxu0 0.0
    %1369 = vmatpush2.msra.mxu0 0.0
    %1370 = vmatprep.subr.mxu0 0.0
    %1371 = vmatpush2.msra.mxu0 0.0
    %1372 = vmatprep.subr.mxu0 0.0
    %1373 = vmatpush2.msra.mxu0 0.0
    %1374 = vmatprep.mubr.f32.mxu0 0.0
    %1375 = vmatmul.mubr.f32.gmra.mxu0 %v1211
    %v1376 = vpop.f32.mrf.mxu0
    %v1377 = vadd.f32 0.0, %v1376
    %v1378 = vpop.f32.mrf.mxu0
    %v1379 = vadd.f32 0.0, %v1378
    %1380 = vmatprep.mubr.f32.mxu0 0.0
    %1381 = vmatmul.mubr.f32.gmra.mxu0 %v1214
    %v1382 = vpop.f32.mrf.mxu0
    %v1383 = vadd.f32 0.0, %v1382
    %v1384 = vpop.f32.mrf.mxu0
    %v1385 = vadd.f32 0.0, %v1384
    %1386 = vmatprep.mubr.f32.mxu0 0.0
    %1387 = vmatmul.mubr.f32.gmra.mxu0 %v1217
    %v1388 = vpop.f32.mrf.mxu0
    %v1389 = vadd.f32 0.0, %v1388
    %v1390 = vpop.f32.mrf.mxu0
    %v1391 = vadd.f32 0.0, %v1390
    %1392 = vmatprep.mubr.f32.mxu0 0.0
    %1393 = vmatmul.mubr.f32.gmra.mxu0 %v1220
    %v1394 = vpop.f32.mrf.mxu0
    %v1395 = vadd.f32 0.0, %v1394
    %v1396 = vpop.f32.mrf.mxu0
    %v1397 = vadd.f32 0.0, %v1396
    %1398 = vmatprep.mubr.f32.mxu0 0.0
    %1399 = vmatmul.mubr.f32.gmra.mxu0 %v1223
    %v1400 = vpop.f32.mrf.mxu0
    %v1401 = vadd.f32 0.0, %v1400
    %v1402 = vpop.f32.mrf.mxu0
    %v1403 = vadd.f32 0.0, %v1402
    %1404 = vmatprep.mubr.f32.mxu0 0.0
    %1405 = vmatmul.mubr.f32.gmra.mxu0 %v1226
    %v1406 = vpop.f32.mrf.mxu0
    %v1407 = vadd.f32 0.0, %v1406
    %v1408 = vpop.f32.mrf.mxu0
    %v1409 = vadd.f32 0.0, %v1408
    %1410 = vmatprep.mubr.f32.mxu0 0.0
    %1411 = vmatmul.mubr.f32.gmra.mxu0 %v1229
    %v1412 = vpop.f32.mrf.mxu0
    %v1413 = vadd.f32 0.0, %v1412
    %v1414 = vpop.f32.mrf.mxu0
    %v1415 = vadd.f32 0.0, %v1414
    %1416 = vmatprep.mubr.f32.mxu0 0.0
    %1417 = vmatmul.mubr.f32.gmra.mxu0 %v1232
    %v1418 = vpop.f32.mrf.mxu0
    %v1419 = vadd.f32 0.0, %v1418
    %v1420 = vpop.f32.mrf.mxu0
    %v1421 = vadd.f32 0.0, %v1420
    %1422 = vmatprep.mubr.f32.mxu0 0.0
    %1423 = vmatmul.mubr.f32.gmra.mxu0 %v1235
    %v1424 = vpop.f32.mrf.mxu0
    %v1425 = vadd.f32 0.0, %v1424
    %v1426 = vpop.f32.mrf.mxu0
    %v1427 = vadd.f32 0.0, %v1426
    %1428 = vmatprep.mubr.f32.mxu0 0.0
    %1429 = vmatmul.mubr.f32.gmra.mxu0 %v1238
    %v1430 = vpop.f32.mrf.mxu0
    %v1431 = vadd.f32 0.0, %v1430
    %v1432 = vpop.f32.mrf.mxu0
    %v1433 = vadd.f32 0.0, %v1432
    %1434 = vmatprep.mubr.f32.mxu0 0.0
    %1435 = vmatmul.mubr.f32.gmra.mxu0 %v1241
    %v1436 = vpop.f32.mrf.mxu0
    %v1437 = vadd.f32 0.0, %v1436
    %v1438 = vpop.f32.mrf.mxu0
    %v1439 = vadd.f32 0.0, %v1438
    %1440 = vmatprep.mubr.f32.mxu0 0.0
    %1441 = vmatmul.mubr.f32.gmra.mxu0 %v1244
    %v1442 = vpop.f32.mrf.mxu0
    %v1443 = vadd.f32 0.0, %v1442
    %v1444 = vpop.f32.mrf.mxu0
    %v1445 = vadd.f32 0.0, %v1444
    %1446 = vmatprep.mubr.f32.mxu0 0.0
    %1447 = vmatmul.mubr.f32.gmra.mxu0 %v1247
    %v1448 = vpop.f32.mrf.mxu0
    %v1449 = vadd.f32 0.0, %v1448
    %v1450 = vpop.f32.mrf.mxu0
    %v1451 = vadd.f32 0.0, %v1450
    %1452 = vmatprep.mubr.f32.mxu0 0.0
    %1453 = vmatmul.mubr.f32.gmra.mxu0 %v1250
    %v1454 = vpop.f32.mrf.mxu0
    %v1455 = vadd.f32 0.0, %v1454
    %v1456 = vpop.f32.mrf.mxu0
    %v1457 = vadd.f32 0.0, %v1456
    %1458 = vmatprep.mubr.f32.mxu0 0.0
    %1459 = vmatmul.mubr.f32.gmra.mxu0 %v1253
    %v1460 = vpop.f32.mrf.mxu0
    %v1461 = vadd.f32 0.0, %v1460
    %v1462 = vpop.f32.mrf.mxu0
    %v1463 = vadd.f32 0.0, %v1462
    %1464 = vmatprep.mubr.f32.mxu0 0.0
    %1465 = vmatmul.mubr.f32.gmra.mxu0 %v1256
    %v1466 = vpop.f32.mrf.mxu0
    %v1467 = vadd.f32 0.0, %v1466
    %v1468 = vpop.f32.mrf.mxu0
    %v1469 = vadd.f32 0.0, %v1468
    %1470 = vmatprep.mubr.f32.mxu0 0.0
    %1471 = vmatmul.mubr.f32.gmra.mxu0 %v1259
    %v1472 = vpop.f32.mrf.mxu0
    %v1473 = vadd.f32 0.0, %v1472
    %v1474 = vpop.f32.mrf.mxu0
    %v1475 = vadd.f32 0.0, %v1474
    %1476 = vmatprep.mubr.f32.mxu0 0.0
    %1477 = vmatmul.mubr.f32.gmra.mxu0 %v1262
    %v1478 = vpop.f32.mrf.mxu0
    %v1479 = vadd.f32 0.0, %v1478
    %v1480 = vpop.f32.mrf.mxu0
    %v1481 = vadd.f32 0.0, %v1480
    %1482 = vmatprep.mubr.f32.mxu0 0.0
    %1483 = vmatmul.mubr.f32.gmra.mxu0 %v1265
    %v1484 = vpop.f32.mrf.mxu0
    %v1485 = vadd.f32 0.0, %v1484
    %v1486 = vpop.f32.mrf.mxu0
    %v1487 = vadd.f32 0.0, %v1486
    %1488 = vmatprep.mubr.f32.mxu0 0.0
    %1489 = vmatmul.mubr.f32.gmra.mxu0 %v1268
    %v1490 = vpop.f32.mrf.mxu0
    %v1491 = vadd.f32 0.0, %v1490
    %v1492 = vpop.f32.mrf.mxu0
    %v1493 = vadd.f32 0.0, %v1492
    %1494 = vmatprep.mubr.f32.mxu0 0.0
    %1495 = vmatmul.mubr.f32.gmra.mxu0 %v1271
    %v1496 = vpop.f32.mrf.mxu0
    %v1497 = vadd.f32 0.0, %v1496
    %v1498 = vpop.f32.mrf.mxu0
    %v1499 = vadd.f32 0.0, %v1498
    %1500 = vmatprep.mubr.f32.mxu0 0.0
    %1501 = vmatmul.mubr.f32.gmra.mxu0 %v1274
    %v1502 = vpop.f32.mrf.mxu0
    %v1503 = vadd.f32 0.0, %v1502
    %v1504 = vpop.f32.mrf.mxu0
    %v1505 = vadd.f32 0.0, %v1504
    %1506 = vmatprep.mubr.f32.mxu0 0.0
    %1507 = vmatmul.mubr.f32.gmra.mxu0 %v1277
    %v1508 = vpop.f32.mrf.mxu0
    %v1509 = vadd.f32 0.0, %v1508
    %v1510 = vpop.f32.mrf.mxu0
    %v1511 = vadd.f32 0.0, %v1510
    %1512 = vmatprep.mubr.f32.mxu0 0.0
    %1513 = vmatmul.mubr.f32.gmra.mxu0 %v1280
    %v1514 = vpop.f32.mrf.mxu0
    %v1515 = vadd.f32 0.0, %v1514
    %v1516 = vpop.f32.mrf.mxu0
    %v1517 = vadd.f32 0.0, %v1516
    %1518 = vmatprep.mubr.f32.mxu0 0.0
    %1519 = vmatmul.mubr.f32.gmra.mxu0 %v1283
    %v1520 = vpop.f32.mrf.mxu0
    %v1521 = vadd.f32 0.0, %v1520
    %v1522 = vpop.f32.mrf.mxu0
    %v1523 = vadd.f32 0.0, %v1522
    %1524 = vmatprep.mubr.f32.mxu0 0.0
    %1525 = vmatmul.mubr.f32.gmra.mxu0 %v1286
    %v1526 = vpop.f32.mrf.mxu0
    %v1527 = vadd.f32 0.0, %v1526
    %v1528 = vpop.f32.mrf.mxu0
    %v1529 = vadd.f32 0.0, %v1528
    %1530 = vmatprep.mubr.f32.mxu0 0.0
    %1531 = vmatmul.mubr.f32.gmra.mxu0 %v1289
    %v1532 = vpop.f32.mrf.mxu0
    %v1533 = vadd.f32 0.0, %v1532
    %v1534 = vpop.f32.mrf.mxu0
    %v1535 = vadd.f32 0.0, %v1534
    %1536 = vmatprep.mubr.f32.mxu0 0.0
    %1537 = vmatmul.mubr.f32.gmra.mxu0 %v1292
    %v1538 = vpop.f32.mrf.mxu0
    %v1539 = vadd.f32 0.0, %v1538
    %v1540 = vpop.f32.mrf.mxu0
    %v1541 = vadd.f32 0.0, %v1540
    %1542 = vmatprep.mubr.f32.mxu0 0.0
    %1543 = vmatmul.mubr.f32.gmra.mxu0 %v1295
    %v1544 = vpop.f32.mrf.mxu0
    %v1545 = vadd.f32 0.0, %v1544
    %v1546 = vpop.f32.mrf.mxu0
    %v1547 = vadd.f32 0.0, %v1546
    %1548 = vmatprep.mubr.f32.mxu0 0.0
    %1549 = vmatmul.mubr.f32.gmra.mxu0 %v1298
    %v1550 = vpop.f32.mrf.mxu0
    %v1551 = vadd.f32 0.0, %v1550
    %v1552 = vpop.f32.mrf.mxu0
    %v1553 = vadd.f32 0.0, %v1552
    %1554 = vmatprep.mubr.f32.mxu0 0.0
    %1555 = vmatmul.mubr.f32.gmra.mxu0 %v1301
    %v1556 = vpop.f32.mrf.mxu0
    %v1557 = vadd.f32 0.0, %v1556
    %v1558 = vpop.f32.mrf.mxu0
    %v1559 = vadd.f32 0.0, %v1558
    %1560 = vmatprep.mubr.f32.mxu0 0.0
    %1561 = vmatmul.mubr.f32.gmra.mxu0 %v1304
    %v1562 = vpop.f32.mrf.mxu0
    %v1563 = vadd.f32 0.0, %v1562
    %v1564 = vpop.f32.mrf.mxu0
    %v1565 = vadd.f32 0.0, %v1564
    %1566 = vdwg.mxu0
    %v1567 = vmul.f32 %v1377, %v468
    %v1568 = vmul.f32 %v1379, %v468
    %v1569 = vmul.f32 %v1383, %v468
    %v1570 = vmul.f32 %v1385, %v468
    %v1571 = vmul.f32 %v1389, %v468
    %v1572 = vmul.f32 %v1391, %v468
    %v1573 = vmul.f32 %v1395, %v468
    %v1574 = vmul.f32 %v1397, %v468
    %v1575 = vmul.f32 %v1401, %v468
    %v1576 = vmul.f32 %v1403, %v468
    %v1577 = vmul.f32 %v1407, %v468
    %v1578 = vmul.f32 %v1409, %v468
    %v1579 = vmul.f32 %v1413, %v468
    %v1580 = vmul.f32 %v1415, %v468
    %v1581 = vmul.f32 %v1419, %v468
    %v1582 = vmul.f32 %v1421, %v468
    %v1583 = vmul.f32 %v1425, %v468
    %v1584 = vmul.f32 %v1427, %v468
    %v1585 = vmul.f32 %v1431, %v468
    %v1586 = vmul.f32 %v1433, %v468
    %v1587 = vmul.f32 %v1437, %v468
    %v1588 = vmul.f32 %v1439, %v468
    %v1589 = vmul.f32 %v1443, %v468
    %v1590 = vmul.f32 %v1445, %v468
    %v1591 = vmul.f32 %v1449, %v468
    %v1592 = vmul.f32 %v1451, %v468
    %v1593 = vmul.f32 %v1455, %v468
    %v1594 = vmul.f32 %v1457, %v468
    %v1595 = vmul.f32 %v1461, %v468
    %v1596 = vmul.f32 %v1463, %v468
    %v1597 = vmul.f32 %v1467, %v468
    %v1598 = vmul.f32 %v1469, %v468
    %v1599 = vmul.f32 %v1473, %v468
    %v1600 = vmul.f32 %v1475, %v468
    %v1601 = vmul.f32 %v1479, %v468
    %v1602 = vmul.f32 %v1481, %v468
    %v1603 = vmul.f32 %v1485, %v468
    %v1604 = vmul.f32 %v1487, %v468
    %v1605 = vmul.f32 %v1491, %v468
    %v1606 = vmul.f32 %v1493, %v468
    %v1607 = vmul.f32 %v1497, %v468
    %v1608 = vmul.f32 %v1499, %v468
    %v1609 = vmul.f32 %v1503, %v468
    %v1610 = vmul.f32 %v1505, %v468
    %v1611 = vmul.f32 %v1509, %v468
    %v1612 = vmul.f32 %v1511, %v468
    %v1613 = vmul.f32 %v1515, %v468
    %v1614 = vmul.f32 %v1517, %v468
    %v1615 = vmul.f32 %v1521, %v468
    %v1616 = vmul.f32 %v1523, %v468
    %v1617 = vmul.f32 %v1527, %v468
    %v1618 = vmul.f32 %v1529, %v468
    %v1619 = vmul.f32 %v1533, %v468
    %v1620 = vmul.f32 %v1535, %v468
    %v1621 = vmul.f32 %v1539, %v468
    %v1622 = vmul.f32 %v1541, %v468
    %v1623 = vmul.f32 %v1545, %v468
    %v1624 = vmul.f32 %v1547, %v468
    %v1625 = vmul.f32 %v1551, %v468
    %v1626 = vmul.f32 %v1553, %v468
    %v1627 = vmul.f32 %v1557, %v468
    %v1628 = vmul.f32 %v1559, %v468
    %v1629 = vmul.f32 %v1563, %v468
    %v1630 = vmul.f32 %v1565, %v468
    %v1631 = vadd.f32 %v1567, %v533
    %v1632 = vadd.f32 %v1568, %v533
    %v1633 = vadd.f32 %v1569, %v533
    %v1634 = vadd.f32 %v1570, %v533
    %v1635 = vadd.f32 %v1571, %v533
    %v1636 = vadd.f32 %v1572, %v533
    %v1637 = vadd.f32 %v1573, %v533
    %v1638 = vadd.f32 %v1574, %v533
    %v1639 = vadd.f32 %v1575, %v533
    %v1640 = vadd.f32 %v1576, %v533
    %v1641 = vadd.f32 %v1577, %v533
    %v1642 = vadd.f32 %v1578, %v533
    %v1643 = vadd.f32 %v1579, %v533
    %v1644 = vadd.f32 %v1580, %v533
    %v1645 = vadd.f32 %v1581, %v533
    %v1646 = vadd.f32 %v1582, %v533
    %v1647 = vadd.f32 %v1583, %v533
    %v1648 = vadd.f32 %v1584, %v533
    %v1649 = vadd.f32 %v1585, %v533
    %v1650 = vadd.f32 %v1586, %v533
    %v1651 = vadd.f32 %v1587, %v533
    %v1652 = vadd.f32 %v1588, %v533
    %v1653 = vadd.f32 %v1589, %v533
    %v1654 = vadd.f32 %v1590, %v533
    %v1655 = vadd.f32 %v1591, %v533
    %v1656 = vadd.f32 %v1592, %v533
    %v1657 = vadd.f32 %v1593, %v533
    %v1658 = vadd.f32 %v1594, %v533
    %v1659 = vadd.f32 %v1595, %v533
    %v1660 = vadd.f32 %v1596, %v533
    %v1661 = vadd.f32 %v1597, %v533
    %v1662 = vadd.f32 %v1598, %v533
    %v1663 = vadd.f32 %v1599, %v533
    %v1664 = vadd.f32 %v1600, %v533
    %v1665 = vadd.f32 %v1601, %v533
    %v1666 = vadd.f32 %v1602, %v533
    %v1667 = vadd.f32 %v1603, %v533
    %v1668 = vadd.f32 %v1604, %v533
    %v1669 = vadd.f32 %v1605, %v533
    %v1670 = vadd.f32 %v1606, %v533
    %v1671 = vadd.f32 %v1607, %v533
    %v1672 = vadd.f32 %v1608, %v533
    %v1673 = vadd.f32 %v1609, %v533
    %v1674 = vadd.f32 %v1610, %v533
    %v1675 = vadd.f32 %v1611, %v533
    %v1676 = vadd.f32 %v1612, %v533
    %v1677 = vadd.f32 %v1613, %v533
    %v1678 = vadd.f32 %v1614, %v533
    %v1679 = vadd.f32 %v1615, %v533
    %v1680 = vadd.f32 %v1616, %v533
    %v1681 = vadd.f32 %v1617, %v533
    %v1682 = vadd.f32 %v1618, %v533
    %v1683 = vadd.f32 %v1619, %v533
    %v1684 = vadd.f32 %v1620, %v533
    %v1685 = vadd.f32 %v1621, %v533
    %v1686 = vadd.f32 %v1622, %v533
    %v1687 = vadd.f32 %v1623, %v533
    %v1688 = vadd.f32 %v1624, %v533
    %v1689 = vadd.f32 %v1625, %v533
    %v1690 = vadd.f32 %v1626, %v533
    %v1691 = vadd.f32 %v1627, %v533
    %v1692 = vadd.f32 %v1628, %v533
    %v1693 = vadd.f32 %v1629, %v533
    %v1694 = vadd.f32 %v1630, %v533
    %v1695 = vmax.f32 %v1631, 0.0
    %v1696 = vmax.f32 %v1632, 0.0
    %v1697 = vmax.f32 %v1633, 0.0
    %v1698 = vmax.f32 %v1634, 0.0
    %v1699 = vmax.f32 %v1635, 0.0
    %v1700 = vmax.f32 %v1636, 0.0
    %v1701 = vmax.f32 %v1637, 0.0
    %v1702 = vmax.f32 %v1638, 0.0
    %v1703 = vmax.f32 %v1639, 0.0
    %v1704 = vmax.f32 %v1640, 0.0
    %v1705 = vmax.f32 %v1641, 0.0
    %v1706 = vmax.f32 %v1642, 0.0
    %v1707 = vmax.f32 %v1643, 0.0
    %v1708 = vmax.f32 %v1644, 0.0
    %v1709 = vmax.f32 %v1645, 0.0
    %v1710 = vmax.f32 %v1646, 0.0
    %v1711 = vmax.f32 %v1647, 0.0
    %v1712 = vmax.f32 %v1648, 0.0
    %v1713 = vmax.f32 %v1649, 0.0
    %v1714 = vmax.f32 %v1650, 0.0
    %v1715 = vmax.f32 %v1651, 0.0
    %v1716 = vmax.f32 %v1652, 0.0
    %v1717 = vmax.f32 %v1653, 0.0
    %v1718 = vmax.f32 %v1654, 0.0
    %v1719 = vmax.f32 %v1655, 0.0
    %v1720 = vmax.f32 %v1656, 0.0
    %v1721 = vmax.f32 %v1657, 0.0
    %v1722 = vmax.f32 %v1658, 0.0
    %v1723 = vmax.f32 %v1659, 0.0
    %v1724 = vmax.f32 %v1660, 0.0
    %v1725 = vmax.f32 %v1661, 0.0
    %v1726 = vmax.f32 %v1662, 0.0
    %v1727 = vmax.f32 %v1663, 0.0
    %v1728 = vmax.f32 %v1664, 0.0
    %v1729 = vmax.f32 %v1665, 0.0
    %v1730 = vmax.f32 %v1666, 0.0
    %v1731 = vmax.f32 %v1667, 0.0
    %v1732 = vmax.f32 %v1668, 0.0
    %v1733 = vmax.f32 %v1669, 0.0
    %v1734 = vmax.f32 %v1670, 0.0
    %v1735 = vmax.f32 %v1671, 0.0
    %v1736 = vmax.f32 %v1672, 0.0
    %v1737 = vmax.f32 %v1673, 0.0
    %v1738 = vmax.f32 %v1674, 0.0
    %v1739 = vmax.f32 %v1675, 0.0
    %v1740 = vmax.f32 %v1676, 0.0
    %v1741 = vmax.f32 %v1677, 0.0
    %v1742 = vmax.f32 %v1678, 0.0
    %v1743 = vmax.f32 %v1679, 0.0
    %v1744 = vmax.f32 %v1680, 0.0
    %v1745 = vmax.f32 %v1681, 0.0
    %v1746 = vmax.f32 %v1682, 0.0
    %v1747 = vmax.f32 %v1683, 0.0
    %v1748 = vmax.f32 %v1684, 0.0
    %v1749 = vmax.f32 %v1685, 0.0
    %v1750 = vmax.f32 %v1686, 0.0
    %v1751 = vmax.f32 %v1687, 0.0
    %v1752 = vmax.f32 %v1688, 0.0
    %v1753 = vmax.f32 %v1689, 0.0
    %v1754 = vmax.f32 %v1690, 0.0
    %v1755 = vmax.f32 %v1691, 0.0
    %v1756 = vmax.f32 %v1692, 0.0
    %v1757 = vmax.f32 %v1693, 0.0
    %v1758 = vmax.f32 %v1694, 0.0
    %v1759 = vxor.u32 %v1695, 2147483648
    %v1760 = vxor.u32 %v1696, 2147483648
    %v1761 = vxor.u32 %v1697, 2147483648
    %v1762 = vxor.u32 %v1698, 2147483648
    %v1763 = vxor.u32 %v1699, 2147483648
    %v1764 = vxor.u32 %v1700, 2147483648
    %v1765 = vxor.u32 %v1701, 2147483648
    %v1766 = vxor.u32 %v1702, 2147483648
    %v1767 = vxor.u32 %v1703, 2147483648
    %v1768 = vxor.u32 %v1704, 2147483648
    %v1769 = vxor.u32 %v1705, 2147483648
    %v1770 = vxor.u32 %v1706, 2147483648
    %v1771 = vxor.u32 %v1707, 2147483648
    %v1772 = vxor.u32 %v1708, 2147483648
    %v1773 = vxor.u32 %v1709, 2147483648
    %v1774 = vxor.u32 %v1710, 2147483648
    %v1775 = vxor.u32 %v1711, 2147483648
    %v1776 = vxor.u32 %v1712, 2147483648
    %v1777 = vxor.u32 %v1713, 2147483648
    %v1778 = vxor.u32 %v1714, 2147483648
    %v1779 = vxor.u32 %v1715, 2147483648
    %v1780 = vxor.u32 %v1716, 2147483648
    %v1781 = vxor.u32 %v1717, 2147483648
    %v1782 = vxor.u32 %v1718, 2147483648
    %v1783 = vxor.u32 %v1719, 2147483648
    %v1784 = vxor.u32 %v1720, 2147483648
    %v1785 = vxor.u32 %v1721, 2147483648
    %v1786 = vxor.u32 %v1722, 2147483648
    %v1787 = vxor.u32 %v1723, 2147483648
    %v1788 = vxor.u32 %v1724, 2147483648
    %v1789 = vxor.u32 %v1725, 2147483648
    %v1790 = vxor.u32 %v1726, 2147483648
    %v1791 = vxor.u32 %v1727, 2147483648
    %v1792 = vxor.u32 %v1728, 2147483648
    %v1793 = vxor.u32 %v1729, 2147483648
    %v1794 = vxor.u32 %v1730, 2147483648
    %v1795 = vxor.u32 %v1731, 2147483648
    %v1796 = vxor.u32 %v1732, 2147483648
    %v1797 = vxor.u32 %v1733, 2147483648
    %v1798 = vxor.u32 %v1734, 2147483648
    %v1799 = vxor.u32 %v1735, 2147483648
    %v1800 = vxor.u32 %v1736, 2147483648
    %v1801 = vxor.u32 %v1737, 2147483648
    %v1802 = vxor.u32 %v1738, 2147483648
    %v1803 = vxor.u32 %v1739, 2147483648
    %v1804 = vxor.u32 %v1740, 2147483648
    %v1805 = vxor.u32 %v1741, 2147483648
    %v1806 = vxor.u32 %v1742, 2147483648
    %v1807 = vxor.u32 %v1743, 2147483648
    %v1808 = vxor.u32 %v1744, 2147483648
    %v1809 = vxor.u32 %v1745, 2147483648
    %v1810 = vxor.u32 %v1746, 2147483648
    %v1811 = vxor.u32 %v1747, 2147483648
    %v1812 = vxor.u32 %v1748, 2147483648
    %v1813 = vxor.u32 %v1749, 2147483648
    %v1814 = vxor.u32 %v1750, 2147483648
    %v1815 = vxor.u32 %v1751, 2147483648
    %v1816 = vxor.u32 %v1752, 2147483648
    %v1817 = vxor.u32 %v1753, 2147483648
    %v1818 = vxor.u32 %v1754, 2147483648
    %v1819 = vxor.u32 %v1755, 2147483648
    %v1820 = vxor.u32 %v1756, 2147483648
    %v1821 = vxor.u32 %v1757, 2147483648
    %v1822 = vxor.u32 %v1758, 2147483648
    %v1823 = vmul.f32 %v1759, 1.442695
    %v1824 = vpow.pop %v1823
    %v1825 = vmul.f32 %v1760, 1.442695
    %v1826 = vpow.pop %v1825
    %v1827 = vmul.f32 %v1761, 1.442695
    %v1828 = vpow.pop %v1827
    %v1829 = vmul.f32 %v1762, 1.442695
    %v1830 = vpow.pop %v1829
    %v1831 = vmul.f32 %v1763, 1.442695
    %v1832 = vpow.pop %v1831
    %v1833 = vmul.f32 %v1764, 1.442695
    %v1834 = vpow.pop %v1833
    %v1835 = vmul.f32 %v1765, 1.442695
    %v1836 = vpow.pop %v1835
    %v1837 = vmul.f32 %v1766, 1.442695
    %v1838 = vpow.pop %v1837
    %v1839 = vmul.f32 %v1767, 1.442695
    %v1840 = vpow.pop %v1839
    %v1841 = vmul.f32 %v1768, 1.442695
    %v1842 = vpow.pop %v1841
    %v1843 = vmul.f32 %v1769, 1.442695
    %v1844 = vpow.pop %v1843
    %v1845 = vmul.f32 %v1770, 1.442695
    %v1846 = vpow.pop %v1845
    %v1847 = vmul.f32 %v1771, 1.442695
    %v1848 = vpow.pop %v1847
    %v1849 = vmul.f32 %v1772, 1.442695
    %v1850 = vpow.pop %v1849
    %v1851 = vmul.f32 %v1773, 1.442695
    %v1852 = vpow.pop %v1851
    %v1853 = vmul.f32 %v1774, 1.442695
    %v1854 = vpow.pop %v1853
    %v1855 = vmul.f32 %v1775, 1.442695
    %v1856 = vpow.pop %v1855
    %v1857 = vmul.f32 %v1776, 1.442695
    %v1858 = vpow.pop %v1857
    %v1859 = vmul.f32 %v1777, 1.442695
    %v1860 = vpow.pop %v1859
    %v1861 = vmul.f32 %v1778, 1.442695
    %v1862 = vpow.pop %v1861
    %v1863 = vmul.f32 %v1779, 1.442695
    %v1864 = vpow.pop %v1863
    %v1865 = vmul.f32 %v1780, 1.442695
    %v1866 = vpow.pop %v1865
    %v1867 = vmul.f32 %v1781, 1.442695
    %v1868 = vpow.pop %v1867
    %v1869 = vmul.f32 %v1782, 1.442695
    %v1870 = vpow.pop %v1869
    %v1871 = vmul.f32 %v1783, 1.442695
    %v1872 = vpow.pop %v1871
    %v1873 = vmul.f32 %v1784, 1.442695
    %v1874 = vpow.pop %v1873
    %v1875 = vmul.f32 %v1785, 1.442695
    %v1876 = vpow.pop %v1875
    %v1877 = vmul.f32 %v1786, 1.442695
    %v1878 = vpow.pop %v1877
    %v1879 = vmul.f32 %v1787, 1.442695
    %v1880 = vpow.pop %v1879
    %v1881 = vmul.f32 %v1788, 1.442695
    %v1882 = vpow.pop %v1881
    %v1883 = vmul.f32 %v1789, 1.442695
    %v1884 = vpow.pop %v1883
    %v1885 = vmul.f32 %v1790, 1.442695
    %v1886 = vpow.pop %v1885
    %v1887 = vmul.f32 %v1791, 1.442695
    %v1888 = vpow.pop %v1887
    %v1889 = vmul.f32 %v1792, 1.442695
    %v1890 = vpow.pop %v1889
    %v1891 = vmul.f32 %v1793, 1.442695
    %v1892 = vpow.pop %v1891
    %v1893 = vmul.f32 %v1794, 1.442695
    %v1894 = vpow.pop %v1893
    %v1895 = vmul.f32 %v1795, 1.442695
    %v1896 = vpow.pop %v1895
    %v1897 = vmul.f32 %v1796, 1.442695
    %v1898 = vpow.pop %v1897
    %v1899 = vmul.f32 %v1797, 1.442695
    %v1900 = vpow.pop %v1899
    %v1901 = vmul.f32 %v1798, 1.442695
    %v1902 = vpow.pop %v1901
    %v1903 = vmul.f32 %v1799, 1.442695
    %v1904 = vpow.pop %v1903
    %v1905 = vmul.f32 %v1800, 1.442695
    %v1906 = vpow.pop %v1905
    %v1907 = vmul.f32 %v1801, 1.442695
    %v1908 = vpow.pop %v1907
    %v1909 = vmul.f32 %v1802, 1.442695
    %v1910 = vpow.pop %v1909
    %v1911 = vmul.f32 %v1803, 1.442695
    %v1912 = vpow.pop %v1911
    %v1913 = vmul.f32 %v1804, 1.442695
    %v1914 = vpow.pop %v1913
    %v1915 = vmul.f32 %v1805, 1.442695
    %v1916 = vpow.pop %v1915
    %v1917 = vmul.f32 %v1806, 1.442695
    %v1918 = vpow.pop %v1917
    %v1919 = vmul.f32 %v1807, 1.442695
    %v1920 = vpow.pop %v1919
    %v1921 = vmul.f32 %v1808, 1.442695
    %v1922 = vpow.pop %v1921
    %v1923 = vmul.f32 %v1809, 1.442695
    %v1924 = vpow.pop %v1923
    %v1925 = vmul.f32 %v1810, 1.442695
    %v1926 = vpow.pop %v1925
    %v1927 = vmul.f32 %v1811, 1.442695
    %v1928 = vpow.pop %v1927
    %v1929 = vmul.f32 %v1812, 1.442695
    %v1930 = vpow.pop %v1929
    %v1931 = vmul.f32 %v1813, 1.442695
    %v1932 = vpow.pop %v1931
    %v1933 = vmul.f32 %v1814, 1.442695
    %v1934 = vpow.pop %v1933
    %v1935 = vmul.f32 %v1815, 1.442695
    %v1936 = vpow.pop %v1935
    %v1937 = vmul.f32 %v1816, 1.442695
    %v1938 = vpow.pop %v1937
    %v1939 = vmul.f32 %v1817, 1.442695
    %v1940 = vpow.pop %v1939
    %v1941 = vmul.f32 %v1818, 1.442695
    %v1942 = vpow.pop %v1941
    %v1943 = vmul.f32 %v1819, 1.442695
    %v1944 = vpow.pop %v1943
    %v1945 = vmul.f32 %v1820, 1.442695
    %v1946 = vpow.pop %v1945
    %v1947 = vmul.f32 %v1821, 1.442695
    %v1948 = vpow.pop %v1947
    %v1949 = vmul.f32 %v1822, 1.442695
    %v1950 = vpow.pop %v1949
    %v1951 = vadd.f32 %v1824, 1.0
    %v1952 = vadd.f32 %v1826, 1.0
    %v1953 = vadd.f32 %v1828, 1.0
    %v1954 = vadd.f32 %v1830, 1.0
    %v1955 = vadd.f32 %v1832, 1.0
    %v1956 = vadd.f32 %v1834, 1.0
    %v1957 = vadd.f32 %v1836, 1.0
    %v1958 = vadd.f32 %v1838, 1.0
    %v1959 = vadd.f32 %v1840, 1.0
    %v1960 = vadd.f32 %v1842, 1.0
    %v1961 = vadd.f32 %v1844, 1.0
    %v1962 = vadd.f32 %v1846, 1.0
    %v1963 = vadd.f32 %v1848, 1.0
    %v1964 = vadd.f32 %v1850, 1.0
    %v1965 = vadd.f32 %v1852, 1.0
    %v1966 = vadd.f32 %v1854, 1.0
    %v1967 = vadd.f32 %v1856, 1.0
    %v1968 = vadd.f32 %v1858, 1.0
    %v1969 = vadd.f32 %v1860, 1.0
    %v1970 = vadd.f32 %v1862, 1.0
    %v1971 = vadd.f32 %v1864, 1.0
    %v1972 = vadd.f32 %v1866, 1.0
    %v1973 = vadd.f32 %v1868, 1.0
    %v1974 = vadd.f32 %v1870, 1.0
    %v1975 = vadd.f32 %v1872, 1.0
    %v1976 = vadd.f32 %v1874, 1.0
    %v1977 = vadd.f32 %v1876, 1.0
    %v1978 = vadd.f32 %v1878, 1.0
    %v1979 = vadd.f32 %v1880, 1.0
    %v1980 = vadd.f32 %v1882, 1.0
    %v1981 = vadd.f32 %v1884, 1.0
    %v1982 = vadd.f32 %v1886, 1.0
    %v1983 = vadd.f32 %v1888, 1.0
    %v1984 = vadd.f32 %v1890, 1.0
    %v1985 = vadd.f32 %v1892, 1.0
    %v1986 = vadd.f32 %v1894, 1.0
    %v1987 = vadd.f32 %v1896, 1.0
    %v1988 = vadd.f32 %v1898, 1.0
    %v1989 = vadd.f32 %v1900, 1.0
    %v1990 = vadd.f32 %v1902, 1.0
    %v1991 = vadd.f32 %v1904, 1.0
    %v1992 = vadd.f32 %v1906, 1.0
    %v1993 = vadd.f32 %v1908, 1.0
    %v1994 = vadd.f32 %v1910, 1.0
    %v1995 = vadd.f32 %v1912, 1.0
    %v1996 = vadd.f32 %v1914, 1.0
    %v1997 = vadd.f32 %v1916, 1.0
    %v1998 = vadd.f32 %v1918, 1.0
    %v1999 = vadd.f32 %v1920, 1.0
    %v2000 = vadd.f32 %v1922, 1.0
    %v2001 = vadd.f32 %v1924, 1.0
    %v2002 = vadd.f32 %v1926, 1.0
    %v2003 = vadd.f32 %v1928, 1.0
    %v2004 = vadd.f32 %v1930, 1.0
    %v2005 = vadd.f32 %v1932, 1.0
    %v2006 = vadd.f32 %v1934, 1.0
    %v2007 = vadd.f32 %v1936, 1.0
    %v2008 = vadd.f32 %v1938, 1.0
    %v2009 = vadd.f32 %v1940, 1.0
    %v2010 = vadd.f32 %v1942, 1.0
    %v2011 = vadd.f32 %v1944, 1.0
    %v2012 = vadd.f32 %v1946, 1.0
    %v2013 = vadd.f32 %v1948, 1.0
    %v2014 = vadd.f32 %v1950, 1.0
    %v2015 = vrcp.pop %v1951
    %v2016 = vmul.f32 1.0, %v2015
    %v2017 = vrcp.pop %v1952
    %v2018 = vmul.f32 1.0, %v2017
    %v2019 = vrcp.pop %v1953
    %v2020 = vmul.f32 1.0, %v2019
    %v2021 = vrcp.pop %v1954
    %v2022 = vmul.f32 1.0, %v2021
    %v2023 = vrcp.pop %v1955
    %v2024 = vmul.f32 1.0, %v2023
    %v2025 = vrcp.pop %v1956
    %v2026 = vmul.f32 1.0, %v2025
    %v2027 = vrcp.pop %v1957
    %v2028 = vmul.f32 1.0, %v2027
    %v2029 = vrcp.pop %v1958
    %v2030 = vmul.f32 1.0, %v2029
    %v2031 = vrcp.pop %v1959
    %v2032 = vmul.f32 1.0, %v2031
    %v2033 = vrcp.pop %v1960
    %v2034 = vmul.f32 1.0, %v2033
    %v2035 = vrcp.pop %v1961
    %v2036 = vmul.f32 1.0, %v2035
    %v2037 = vrcp.pop %v1962
    %v2038 = vmul.f32 1.0, %v2037
    %v2039 = vrcp.pop %v1963
    %v2040 = vmul.f32 1.0, %v2039
    %v2041 = vrcp.pop %v1964
    %v2042 = vmul.f32 1.0, %v2041
    %v2043 = vrcp.pop %v1965
    %v2044 = vmul.f32 1.0, %v2043
    %v2045 = vrcp.pop %v1966
    %v2046 = vmul.f32 1.0, %v2045
    %v2047 = vrcp.pop %v1967
    %v2048 = vmul.f32 1.0, %v2047
    %v2049 = vrcp.pop %v1968
    %v2050 = vmul.f32 1.0, %v2049
    %v2051 = vrcp.pop %v1969
    %v2052 = vmul.f32 1.0, %v2051
    %v2053 = vrcp.pop %v1970
    %v2054 = vmul.f32 1.0, %v2053
    %v2055 = vrcp.pop %v1971
    %v2056 = vmul.f32 1.0, %v2055
    %v2057 = vrcp.pop %v1972
    %v2058 = vmul.f32 1.0, %v2057
    %v2059 = vrcp.pop %v1973
    %v2060 = vmul.f32 1.0, %v2059
    %v2061 = vrcp.pop %v1974
    %v2062 = vmul.f32 1.0, %v2061
    %v2063 = vrcp.pop %v1975
    %v2064 = vmul.f32 1.0, %v2063
    %v2065 = vrcp.pop %v1976
    %v2066 = vmul.f32 1.0, %v2065
    %v2067 = vrcp.pop %v1977
    %v2068 = vmul.f32 1.0, %v2067
    %v2069 = vrcp.pop %v1978
    %v2070 = vmul.f32 1.0, %v2069
    %v2071 = vrcp.pop %v1979
    %v2072 = vmul.f32 1.0, %v2071
    %v2073 = vrcp.pop %v1980
    %v2074 = vmul.f32 1.0, %v2073
    %v2075 = vrcp.pop %v1981
    %v2076 = vmul.f32 1.0, %v2075
    %v2077 = vrcp.pop %v1982
    %v2078 = vmul.f32 1.0, %v2077
    %v2079 = vrcp.pop %v1983
    %v2080 = vmul.f32 1.0, %v2079
    %v2081 = vrcp.pop %v1984
    %v2082 = vmul.f32 1.0, %v2081
    %v2083 = vrcp.pop %v1985
    %v2084 = vmul.f32 1.0, %v2083
    %v2085 = vrcp.pop %v1986
    %v2086 = vmul.f32 1.0, %v2085
    %v2087 = vrcp.pop %v1987
    %v2088 = vmul.f32 1.0, %v2087
    %v2089 = vrcp.pop %v1988
    %v2090 = vmul.f32 1.0, %v2089
    %v2091 = vrcp.pop %v1989
    %v2092 = vmul.f32 1.0, %v2091
    %v2093 = vrcp.pop %v1990
    %v2094 = vmul.f32 1.0, %v2093
    %v2095 = vrcp.pop %v1991
    %v2096 = vmul.f32 1.0, %v2095
    %v2097 = vrcp.pop %v1992
    %v2098 = vmul.f32 1.0, %v2097
    %v2099 = vrcp.pop %v1993
    %v2100 = vmul.f32 1.0, %v2099
    %v2101 = vrcp.pop %v1994
    %v2102 = vmul.f32 1.0, %v2101
    %v2103 = vrcp.pop %v1995
    %v2104 = vmul.f32 1.0, %v2103
    %v2105 = vrcp.pop %v1996
    %v2106 = vmul.f32 1.0, %v2105
    %v2107 = vrcp.pop %v1997
    %v2108 = vmul.f32 1.0, %v2107
    %v2109 = vrcp.pop %v1998
    %v2110 = vmul.f32 1.0, %v2109
    %v2111 = vrcp.pop %v1999
    %v2112 = vmul.f32 1.0, %v2111
    %v2113 = vrcp.pop %v2000
    %v2114 = vmul.f32 1.0, %v2113
    %v2115 = vrcp.pop %v2001
    %v2116 = vmul.f32 1.0, %v2115
    %v2117 = vrcp.pop %v2002
    %v2118 = vmul.f32 1.0, %v2117
    %v2119 = vrcp.pop %v2003
    %v2120 = vmul.f32 1.0, %v2119
    %v2121 = vrcp.pop %v2004
    %v2122 = vmul.f32 1.0, %v2121
    %v2123 = vrcp.pop %v2005
    %v2124 = vmul.f32 1.0, %v2123
    %v2125 = vrcp.pop %v2006
    %v2126 = vmul.f32 1.0, %v2125
    %v2127 = vrcp.pop %v2007
    %v2128 = vmul.f32 1.0, %v2127
    %v2129 = vrcp.pop %v2008
    %v2130 = vmul.f32 1.0, %v2129
    %v2131 = vrcp.pop %v2009
    %v2132 = vmul.f32 1.0, %v2131
    %v2133 = vrcp.pop %v2010
    %v2134 = vmul.f32 1.0, %v2133
    %v2135 = vrcp.pop %v2011
    %v2136 = vmul.f32 1.0, %v2135
    %v2137 = vrcp.pop %v2012
    %v2138 = vmul.f32 1.0, %v2137
    %v2139 = vrcp.pop %v2013
    %v2140 = vmul.f32 1.0, %v2139
    %v2141 = vrcp.pop %v2014
    %v2142 = vmul.f32 1.0, %v2141
    %v2143 = vadd.f32 %v2016, %v2020
    %v2144 = vadd.f32 %v2143, %v2024
    %v2145 = vadd.f32 %v2144, %v2028
    %v2146 = vadd.f32 %v2145, %v2032
    %v2147 = vadd.f32 %v2146, %v2036
    %v2148 = vadd.f32 %v2147, %v2040
    %v2149 = vadd.f32 %v2148, %v2044
    %v2150 = vadd.f32 %v2149, %v2048
    %v2151 = vadd.f32 %v2150, %v2052
    %v2152 = vadd.f32 %v2151, %v2056
    %v2153 = vadd.f32 %v2152, %v2060
    %v2154 = vadd.f32 %v2153, %v2064
    %v2155 = vadd.f32 %v2154, %v2068
    %v2156 = vadd.f32 %v2155, %v2072
    %v2157 = vadd.f32 %v2156, %v2076
    %v2158 = vadd.f32 %v2157, %v2080
    %v2159 = vadd.f32 %v2158, %v2084
    %v2160 = vadd.f32 %v2159, %v2088
    %v2161 = vadd.f32 %v2160, %v2092
    %v2162 = vadd.f32 %v2161, %v2096
    %v2163 = vadd.f32 %v2162, %v2100
    %v2164 = vadd.f32 %v2163, %v2104
    %v2165 = vadd.f32 %v2164, %v2108
    %v2166 = vadd.f32 %v2165, %v2112
    %v2167 = vadd.f32 %v2166, %v2116
    %v2168 = vadd.f32 %v2167, %v2120
    %v2169 = vadd.f32 %v2168, %v2124
    %v2170 = vadd.f32 %v2169, %v2128
    %v2171 = vadd.f32 %v2170, %v2132
    %v2172 = vadd.f32 %v2171, %v2136
    %v2173 = vadd.f32 %v2172, %v2140
    %v2174 = vrot.slane %v2173, 4
    %v2175 = vadd.f32 %v2173, %v2174
    %v2176 = vrot.slane %v2175, 2
    %v2177 = vadd.f32 %v2175, %v2176
    %v2178 = vrot.slane %v2177, 1
    %v2179 = vadd.f32 %v2177, %v2178
    %v2180 = vadd.f32 %v2018, %v2022
    %v2181 = vadd.f32 %v2180, %v2026
    %v2182 = vadd.f32 %v2181, %v2030
    %v2183 = vadd.f32 %v2182, %v2034
    %v2184 = vadd.f32 %v2183, %v2038
    %v2185 = vadd.f32 %v2184, %v2042
    %v2186 = vadd.f32 %v2185, %v2046
    %v2187 = vadd.f32 %v2186, %v2050
    %v2188 = vadd.f32 %v2187, %v2054
    %v2189 = vadd.f32 %v2188, %v2058
    %v2190 = vadd.f32 %v2189, %v2062
    %v2191 = vadd.f32 %v2190, %v2066
    %v2192 = vadd.f32 %v2191, %v2070
    %v2193 = vadd.f32 %v2192, %v2074
    %v2194 = vadd.f32 %v2193, %v2078
    %v2195 = vadd.f32 %v2194, %v2082
    %v2196 = vadd.f32 %v2195, %v2086
    %v2197 = vadd.f32 %v2196, %v2090
    %v2198 = vadd.f32 %v2197, %v2094
    %v2199 = vadd.f32 %v2198, %v2098
    %v2200 = vadd.f32 %v2199, %v2102
    %v2201 = vadd.f32 %v2200, %v2106
    %v2202 = vadd.f32 %v2201, %v2110
    %v2203 = vadd.f32 %v2202, %v2114
    %v2204 = vadd.f32 %v2203, %v2118
    %v2205 = vadd.f32 %v2204, %v2122
    %v2206 = vadd.f32 %v2205, %v2126
    %v2207 = vadd.f32 %v2206, %v2130
    %v2208 = vadd.f32 %v2207, %v2134
    %v2209 = vadd.f32 %v2208, %v2138
    %v2210 = vadd.f32 %v2209, %v2142
    %v2211 = vrot.slane %v2210, 4
    %v2212 = vadd.f32 %v2210, %v2211
    %v2213 = vrot.slane %v2212, 2
    %v2214 = vadd.f32 %v2212, %v2213
    %v2215 = vrot.slane %v2214, 1
    %v2216 = vadd.f32 %v2214, %v2215
    %v2217 = vpow.f32 %v2179, %v1120
    %v2218 = vpow.f32 %v2216, %v1120
    %v2219 = vrcp.pop %v2217
    %v2220 = vrcp.pop %v2218
    %v2223 = vcombine.low %v2219, %v2220
    %v2225 = vmul.f32 %v1142, %v2223
    %v2227 = vcombine.high %v2225, %v2225
    %v2229 = vsel %vm206, %v2225, 0.0
    %v2230 = vsel %vm206, %v2227, 0.0
    %v2231 = vadd.f32 %v2229, %v2230
    %2232 = vadd.xlane.f32.xlu0 %v2231
    %v2233 = vpop.xlane.xlu0 %2232
    %v2234 = vmul.f32 %v2233, 0.00390625
    %s2235 = scalar_lea.vmem %s2, 4
    %2236 = vst.msk [vmem:[%s2235] sm:$0xf] %vm1139, %v2234
    // Predicated region
    $region18: #{tpu_custom_call.1} parent=1 // pred_check
      _
    $region19: #{tpu_custom_call.1} parent=1 // pred_check_branch
      %2238 = sbr.rel (0) target = $region21
    $region20: #{tpu_custom_call.1} parent=1 // pred_region
      _
    $region21: #{tpu_custom_call.1} parent=1 // pred_fallthru
      _
    // Predicated region
    $region22: #{tpu_custom_call.1} parent=1 // pred_check
      _
    $region23: #{tpu_custom_call.1} parent=1 // pred_check_branch
      %2240 = sbr.rel (0) target = $region25
    $region24: #{tpu_custom_call.1} parent=1 // pred_region
      _
    $region25: #{tpu_custom_call.1} parent=1 // pred_fallthru
      _
    %2241 = vsyncpa [#allocation3], 1
    %2242 = vsyncpa [#allocation4], 1

</llo_original>
